<compile_context>
chip_gen: v7x
topology: tpu7x:2x2x1
jax: 0.10.0
libtpu: 0.0.40
codegen_flags: <defaults>
</compile_context>

<pallas_src>
import jax
import jax.numpy as jnp
from jax.experimental import pallas as pl
from jax.experimental.pallas import tpu as pltpu


# Conservative live-VMEM working-set budget: fits v5e's 16 MiB scoped default
# and leaves headroom on v6e (128 MiB) / v7x (64 MiB physical).
_VMEM_BUDGET_BYTES = 12 * 1024 * 1024
# ~2x double-buffered input + 2x double-buffered output + transpose temp/headroom.
_WS_FACTOR = 6
# Below this total size XLA's permute is already at the HBM roofline.
_SMALL_BYTES = 1 << 20
# Target per-step block bytes to amortize the ~0.35 us fixed grid-step overhead.
_TARGET_BLOCK_BYTES = 2 << 20
# Explicit scoped-VMEM limit: above every generation's default, below v7x physical.
_VMEM_LIMIT_BYTES = 32 * 1024 * 1024


def _largest_mult_divisor(dim, base, cap):
    """Largest multiple of `base` that divides `dim` and is <= cap (0 if none)."""
    best = 0
    k = base
    cap = min(cap, dim)
    while k <= cap:
        if dim % k == 0:
            best = k
        k += base
    return best


def _make_kernel(tile_b, tile_c):
    # Chunk the (tile_n, tile_c)-transpose over 128-lane C slices: each chunk's
    # lane-dense store issues as soon as its XLU transpose drains, instead of
    # waiting on a whole-block transpose temp.
    c_chunk = 128 if (tile_c % 128 == 0) else tile_c

    def kernel(x_ref, o_ref):
        # x_ref: (tile_b, tile_n, tile_c) -> o_ref: (tile_b, tile_c, tile_n)
        for b in range(tile_b):
            for c0 in range(0, tile_c, c_chunk):
                o_ref[b, c0:c0 + c_chunk, :] = jnp.transpose(
                    x_ref[b, :, c0:c0 + c_chunk], (1, 0))

    return kernel


def _xla_fallback(x, B, C, H, W):
    # Pure permute at tiny / narrow-C sizes: XLA is already at the HBM roofline,
    # a custom kernel would only add lane-masked loads + per-step overhead.
    return jnp.transpose(x, (0, 2, 1)).reshape(B, C, H, W)


def token2image(x, H, W):
    """x: (B, N, C) with N == H*W  ->  (B, C, H, W)  (PyTorch Token2Image)."""
    B, N, C = x.shape
    assert N == H * W, f"N={N} must equal H*W={H * W}"
    itemsize = jnp.dtype(x.dtype).itemsize

    if C < 128 or B * N * C * itemsize < _SMALL_BYTES:
        return _xla_fallback(x, B, C, H, W)

    # ---- byte-budgeted tile selection -------------------------------------
    # Channel tile: multiple of 128 (lane-dense input loads), capped at 512 so
    # per-step VMEM is independent of C; full C when C is not a 128-multiple.
    tile_c = _largest_mult_divisor(C, 128, 512) or C

    # Token tile: largest multiple of 128 dividing N that keeps the working
    # set (for tile_b == 1) under budget.
    cap_n = max(128, _VMEM_BUDGET_BYTES // (_WS_FACTOR * tile_c * itemsize))
    tile_n = _largest_mult_divisor(N, 128, cap_n)
    if tile_n == 0:
        if _WS_FACTOR * N * tile_c * itemsize <= _VMEM_BUDGET_BYTES:
            tile_n = N                              # full token axis, in budget
        else:
            return _xla_fallback(x, B, C, H, W)     # awkward large N: defer to XLA

    # Batch tile: fold several images per step when per-image slabs are small.
    slab_bytes = tile_n * tile_c * itemsize
    tile_b = 1
    if slab_bytes < _TARGET_BLOCK_BYTES:
        max_tb = min(_VMEM_BUDGET_BYTES // (_WS_FACTOR * slab_bytes),
                     -(-_TARGET_BLOCK_BYTES // slab_bytes))          # ceil div
        max_tb = max(1, min(max_tb, B))
        for tb in range(max_tb, 0, -1):
            if B % tb == 0:
                tile_b = tb
                break

    grid = (B // tile_b, N // tile_n, C // tile_c)

    out = pl.pallas_call(
        _make_kernel(tile_b, tile_c),
        out_shape=jax.ShapeDtypeStruct((B, C, N), x.dtype),
        grid=grid,
        in_specs=[pl.BlockSpec((tile_b, tile_n, tile_c),
                               lambda b, n, c: (b, n, c))],
        out_specs=pl.BlockSpec((tile_b, tile_c, tile_n),
                               lambda b, n, c: (b, c, n)),
        compiler_params=pltpu.CompilerParams(
            dimension_semantics=("parallel", "parallel", "parallel"),
            vmem_limit_bytes=_VMEM_LIMIT_BYTES),
    )(x)

    # (B, C, N) -> (B, C, H, W): contiguous, metadata-only reshape.
    return out.reshape(B, C, H, W)


if __name__ == "__main__":
    key = jax.random.PRNGKey(0)
    k1, k2 = jax.random.split(key)

    # 1) Module's small demo shape (C=4 < 128) -> served by the XLA fallback.
    B, C, H, W = 2, 4, 16, 16
    x_small = jax.random.normal(k1, (B, H * W, C), jnp.float32)
    out_small = jax.block_until_ready(token2image(x_small, H, W))
    ref_small = jnp.transpose(x_small, (0, 2, 1)).reshape(B, C, H, W)
    assert out_small.shape == (B, C, H, W)
    assert jnp.array_equal(out_small, ref_small), "fallback mismatch vs reference"

    # 2) Shape that exercises the Pallas kernel path (C >= 128, >= 1 MiB total).
    B, C, H, W = 4, 128, 32, 32
    x_big = jax.random.normal(k2, (B, H * W, C), jnp.float32)
    out_big = jax.block_until_ready(token2image(x_big, H, W))
    ref_big = jnp.transpose(x_big, (0, 2, 1)).reshape(B, C, H, W)
    assert out_big.shape == (B, C, H, W)
    assert jnp.array_equal(out_big, ref_big), "pallas mismatch vs reference"

    print("KERNEL_OK")
</pallas_src>

<mosaic_0001>
module attributes {stable_mosaic.version = 11 : i64} {
  func.func @kernel(%arg0: i32, %arg1: i32, %arg2: i32, %arg3: memref<4x1024x128xf32, #tpu.memory_space<vmem>>, %arg4: memref<4x128x1024xf32, #tpu.memory_space<vmem>>) attributes {dimension_semantics = [#tpu.dimension_semantics<parallel>, #tpu.dimension_semantics<parallel>, #tpu.dimension_semantics<parallel>], iteration_bounds = array<i64: 1, 1, 1>, scalar_prefetch = 0 : i64, scratch_operands = 0 : i64, tpu.core_type = #tpu.core_type<tc>, window_params = [{transform_indices = @transform_0, window_bounds = array<i64: 4, 1024, 128>}, {transform_indices = @transform_1, window_bounds = array<i64: 4, 128, 1024>}]} {
    %c0 = arith.constant 0 : index
    %c0_0 = arith.constant 0 : index
    %c0_1 = arith.constant 0 : index
    %0 = vector.load %arg3[%c0, %c0_0, %c0_1] : memref<4x1024x128xf32, #tpu.memory_space<vmem>>, vector<1x1024x128xf32>
    %1 = vector.shape_cast %0 : vector<1x1024x128xf32> to vector<1024x128xf32>
    %2 = tpu.transpose %1, [1, 0] : vector<1024x128xf32> -> vector<128x1024xf32>
    %c0_2 = arith.constant 0 : index
    %c0_3 = arith.constant 0 : index
    %c0_4 = arith.constant 0 : index
    %3 = vector.load %arg4[%c0_2, %c0_3, %c0_4] : memref<4x128x1024xf32, #tpu.memory_space<vmem>>, vector<1x128x1024xf32>
    %4 = vector.shape_cast %3 : vector<1x128x1024xf32> to vector<128x1024xf32>
    %5 = vector.shape_cast %2 : vector<128x1024xf32> to vector<1x128x1024xf32>
    tpu.vector_store %arg4[%c0_2, %c0_3, %c0_4], %5 {strides = array<i32>} : memref<4x128x1024xf32, #tpu.memory_space<vmem>>, vector<1x128x1024xf32>,
    %c1 = arith.constant 1 : index
    %c0_5 = arith.constant 0 : index
    %c0_6 = arith.constant 0 : index
    %6 = vector.load %arg3[%c1, %c0_5, %c0_6] : memref<4x1024x128xf32, #tpu.memory_space<vmem>>, vector<1x1024x128xf32>
    %7 = vector.shape_cast %6 : vector<1x1024x128xf32> to vector<1024x128xf32>
    %8 = tpu.transpose %7, [1, 0] : vector<1024x128xf32> -> vector<128x1024xf32>
    %c1_7 = arith.constant 1 : index
    %c0_8 = arith.constant 0 : index
    %c0_9 = arith.constant 0 : index
    %9 = vector.load %arg4[%c1_7, %c0_8, %c0_9] : memref<4x128x1024xf32, #tpu.memory_space<vmem>>, vector<1x128x1024xf32>
    %10 = vector.shape_cast %9 : vector<1x128x1024xf32> to vector<128x1024xf32>
    %11 = vector.shape_cast %8 : vector<128x1024xf32> to vector<1x128x1024xf32>
    tpu.vector_store %arg4[%c1_7, %c0_8, %c0_9], %11 {strides = array<i32>} : memref<4x128x1024xf32, #tpu.memory_space<vmem>>, vector<1x128x1024xf32>,
    %c2 = arith.constant 2 : index
    %c0_10 = arith.constant 0 : index
    %c0_11 = arith.constant 0 : index
    %12 = vector.load %arg3[%c2, %c0_10, %c0_11] : memref<4x1024x128xf32, #tpu.memory_space<vmem>>, vector<1x1024x128xf32>
    %13 = vector.shape_cast %12 : vector<1x1024x128xf32> to vector<1024x128xf32>
    %14 = tpu.transpose %13, [1, 0] : vector<1024x128xf32> -> vector<128x1024xf32>
    %c2_12 = arith.constant 2 : index
    %c0_13 = arith.constant 0 : index
    %c0_14 = arith.constant 0 : index
    %15 = vector.load %arg4[%c2_12, %c0_13, %c0_14] : memref<4x128x1024xf32, #tpu.memory_space<vmem>>, vector<1x128x1024xf32>
    %16 = vector.shape_cast %15 : vector<1x128x1024xf32> to vector<128x1024xf32>
    %17 = vector.shape_cast %14 : vector<128x1024xf32> to vector<1x128x1024xf32>
    tpu.vector_store %arg4[%c2_12, %c0_13, %c0_14], %17 {strides = array<i32>} : memref<4x128x1024xf32, #tpu.memory_space<vmem>>, vector<1x128x1024xf32>,
    %c3 = arith.constant 3 : index
    %c0_15 = arith.constant 0 : index
    %c0_16 = arith.constant 0 : index
    %18 = vector.load %arg3[%c3, %c0_15, %c0_16] : memref<4x1024x128xf32, #tpu.memory_space<vmem>>, vector<1x1024x128xf32>
    %19 = vector.shape_cast %18 : vector<1x1024x128xf32> to vector<1024x128xf32>
    %20 = tpu.transpose %19, [1, 0] : vector<1024x128xf32> -> vector<128x1024xf32>
    %c3_17 = arith.constant 3 : index
    %c0_18 = arith.constant 0 : index
    %c0_19 = arith.constant 0 : index
    %21 = vector.load %arg4[%c3_17, %c0_18, %c0_19] : memref<4x128x1024xf32, #tpu.memory_space<vmem>>, vector<1x128x1024xf32>
    %22 = vector.shape_cast %21 : vector<1x128x1024xf32> to vector<128x1024xf32>
    %23 = vector.shape_cast %20 : vector<128x1024xf32> to vector<1x128x1024xf32>
    tpu.vector_store %arg4[%c3_17, %c0_18, %c0_19], %23 {strides = array<i32>} : memref<4x128x1024xf32, #tpu.memory_space<vmem>>, vector<1x128x1024xf32>,
    return
  }
  func.func @transform_0(%arg0: i32, %arg1: i32, %arg2: i32) -> (i32, i32, i32) {
    %c0_i32 = arith.constant 0 : i32
    return %arg0, %arg1, %arg2 : i32, i32, i32
  }
  func.func @transform_1(%arg0: i32, %arg1: i32, %arg2: i32) -> (i32, i32, i32) {
    %c0_i32 = arith.constant 0 : i32
    return %arg0, %arg2, %arg1 : i32, i32, i32
  }
}

</mosaic_0001>

<llo_original>
// kernel: tpu_custom_call.1
$region0: #{tpu_custom_call.1}
  #allocation0 [shape = 'u32[]', space=smem, size = 0x4, offset = 0x4, fixed_abs, tag = 'smem constant byte address 0x4 - core index']
  #allocation1 [shape = 'u32[144,128]{1,0:T(1,128)}', space=vmem, size = 0x12000, scoped, tag = 'internal scratch']
  %s0 = inlined_call_operand.hbm [shape: f32[4,1024,128], index: 0, kind: input, shape index: {}]
  %s1 = inlined_call_operand.hbm [shape: f32[4,128,1024], index: 1, kind: output, shape index: {}]
  %s2 = sld [smem:[#allocation0]]
  $region18: #{tpu_custom_call.1} parent=0
    _
  %s4 = ssub.s32 1, %s2
  %s5 = scalar_select 0, %s4, %s2
  $region1: #{tpu_custom_call.1} parent=0
    #allocation2 [shape = 'u8[2097152]{0}', space=vmem, size = 0x200000, scoped, tag = 'input window, operand 0, single buffered']
    #allocation3 [shape = 's32[1]{0}', space=sflag, size = 0x4, scoped, tag = 'scoped memory for tpu_custom_call.1']
    #allocation4 [shape = 's32[1]{0}', space=sflag, size = 0x4, scoped, tag = 'scoped memory for tpu_custom_call.1']
    #allocation5 [shape = 'u8[2097152]{0}', space=vmem, size = 0x200000, scoped, tag = 'output window, operand 0, single buffered']
    %6 = vsyncpa [#allocation3], 0
    %7 = vsyncpa [#allocation4], 0
    // Predicated region
    $region2: #{tpu_custom_call.1} parent=1 // pred_check
      _
    $region3: #{tpu_custom_call.1} parent=1 // pred_check_branch
      %9 = sbr.rel (0) target = $region5
    $region4: #{tpu_custom_call.1} parent=1 // pred_region
      %s11 = ssub.s32 65536, 65536
      %12 = vsyncadd [#allocation3], %s11
      %s13 = sshll.u32 [#allocation2], 4
      %s14 = int_to_ptr.vmem [resolvable:$true] %s13
      %19 = dma.hbm_to_vmem [thread:$0]  %s0, 65536, %s14, [#allocation3], 128, 128, 8
    $region5: #{tpu_custom_call.1} parent=1 // pred_fallthru
      _
    // Predicated region
    $region6: #{tpu_custom_call.1} parent=1 // pred_check
      _
    $region7: #{tpu_custom_call.1} parent=1 // pred_check_branch
      %21 = sbr.rel (0) target = $region9
    $region8: #{tpu_custom_call.1} parent=1 // pred_region
      %22 = dma.done [#allocation3], 65536
    $region9: #{tpu_custom_call.1} parent=1 // pred_fallthru
      _
    %v23 = vld [vmem:[#allocation2] sm:$0xff]
    %v24 = vld [vmem:[#allocation2 + $0x8] sm:$0xff]
    %v25 = vld [vmem:[#allocation2 + $0x10] sm:$0xff]
    %v26 = vld [vmem:[#allocation2 + $0x18] sm:$0xff]
    %v27 = vld [vmem:[#allocation2 + $0x20] sm:$0xff]
    %v28 = vld [vmem:[#allocation2 + $0x28] sm:$0xff]
    %v29 = vld [vmem:[#allocation2 + $0x30] sm:$0xff]
    %v30 = vld [vmem:[#allocation2 + $0x38] sm:$0xff]
    %v31 = vld [vmem:[#allocation2 + $0x40] sm:$0xff]
    %v32 = vld [vmem:[#allocation2 + $0x48] sm:$0xff]
    %v33 = vld [vmem:[#allocation2 + $0x50] sm:$0xff]
    %v34 = vld [vmem:[#allocation2 + $0x58] sm:$0xff]
    %v35 = vld [vmem:[#allocation2 + $0x60] sm:$0xff]
    %v36 = vld [vmem:[#allocation2 + $0x68] sm:$0xff]
    %v37 = vld [vmem:[#allocation2 + $0x70] sm:$0xff]
    %v38 = vld [vmem:[#allocation2 + $0x78] sm:$0xff]
    %v39 = vld [vmem:[#allocation2 + $0x80] sm:$0xff]
    %v40 = vld [vmem:[#allocation2 + $0x88] sm:$0xff]
    %v41 = vld [vmem:[#allocation2 + $0x90] sm:$0xff]
    %v42 = vld [vmem:[#allocation2 + $0x98] sm:$0xff]
    %v43 = vld [vmem:[#allocation2 + $0xa0] sm:$0xff]
    %v44 = vld [vmem:[#allocation2 + $0xa8] sm:$0xff]
    %v45 = vld [vmem:[#allocation2 + $0xb0] sm:$0xff]
    %v46 = vld [vmem:[#allocation2 + $0xb8] sm:$0xff]
    %v47 = vld [vmem:[#allocation2 + $0xc0] sm:$0xff]
    %v48 = vld [vmem:[#allocation2 + $0xc8] sm:$0xff]
    %v49 = vld [vmem:[#allocation2 + $0xd0] sm:$0xff]
    %v50 = vld [vmem:[#allocation2 + $0xd8] sm:$0xff]
    %v51 = vld [vmem:[#allocation2 + $0xe0] sm:$0xff]
    %v52 = vld [vmem:[#allocation2 + $0xe8] sm:$0xff]
    %v53 = vld [vmem:[#allocation2 + $0xf0] sm:$0xff]
    %v54 = vld [vmem:[#allocation2 + $0xf8] sm:$0xff]
    %v55 = vld [vmem:[#allocation2 + $0x100] sm:$0xff]
    %v56 = vld [vmem:[#allocation2 + $0x108] sm:$0xff]
    %v57 = vld [vmem:[#allocation2 + $0x110] sm:$0xff]
    %v58 = vld [vmem:[#allocation2 + $0x118] sm:$0xff]
    %v59 = vld [vmem:[#allocation2 + $0x120] sm:$0xff]
    %v60 = vld [vmem:[#allocation2 + $0x128] sm:$0xff]
    %v61 = vld [vmem:[#allocation2 + $0x130] sm:$0xff]
    %v62 = vld [vmem:[#allocation2 + $0x138] sm:$0xff]
    %v63 = vld [vmem:[#allocation2 + $0x140] sm:$0xff]
    %v64 = vld [vmem:[#allocation2 + $0x148] sm:$0xff]
    %v65 = vld [vmem:[#allocation2 + $0x150] sm:$0xff]
    %v66 = vld [vmem:[#allocation2 + $0x158] sm:$0xff]
    %v67 = vld [vmem:[#allocation2 + $0x160] sm:$0xff]
    %v68 = vld [vmem:[#allocation2 + $0x168] sm:$0xff]
    %v69 = vld [vmem:[#allocation2 + $0x170] sm:$0xff]
    %v70 = vld [vmem:[#allocation2 + $0x178] sm:$0xff]
    %v71 = vld [vmem:[#allocation2 + $0x180] sm:$0xff]
    %v72 = vld [vmem:[#allocation2 + $0x188] sm:$0xff]
    %v73 = vld [vmem:[#allocation2 + $0x190] sm:$0xff]
    %v74 = vld [vmem:[#allocation2 + $0x198] sm:$0xff]
    %v75 = vld [vmem:[#allocation2 + $0x1a0] sm:$0xff]
    %v76 = vld [vmem:[#allocation2 + $0x1a8] sm:$0xff]
    %v77 = vld [vmem:[#allocation2 + $0x1b0] sm:$0xff]
    %v78 = vld [vmem:[#allocation2 + $0x1b8] sm:$0xff]
    %v79 = vld [vmem:[#allocation2 + $0x1c0] sm:$0xff]
    %v80 = vld [vmem:[#allocation2 + $0x1c8] sm:$0xff]
    %v81 = vld [vmem:[#allocation2 + $0x1d0] sm:$0xff]
    %v82 = vld [vmem:[#allocation2 + $0x1d8] sm:$0xff]
    %v83 = vld [vmem:[#allocation2 + $0x1e0] sm:$0xff]
    %v84 = vld [vmem:[#allocation2 + $0x1e8] sm:$0xff]
    %v85 = vld [vmem:[#allocation2 + $0x1f0] sm:$0xff]
    %v86 = vld [vmem:[#allocation2 + $0x1f8] sm:$0xff]
    %v87 = vld [vmem:[#allocation2 + $0x200] sm:$0xff]
    %v88 = vld [vmem:[#allocation2 + $0x208] sm:$0xff]
    %v89 = vld [vmem:[#allocation2 + $0x210] sm:$0xff]
    %v90 = vld [vmem:[#allocation2 + $0x218] sm:$0xff]
    %v91 = vld [vmem:[#allocation2 + $0x220] sm:$0xff]
    %v92 = vld [vmem:[#allocation2 + $0x228] sm:$0xff]
    %v93 = vld [vmem:[#allocation2 + $0x230] sm:$0xff]
    %v94 = vld [vmem:[#allocation2 + $0x238] sm:$0xff]
    %v95 = vld [vmem:[#allocation2 + $0x240] sm:$0xff]
    %v96 = vld [vmem:[#allocation2 + $0x248] sm:$0xff]
    %v97 = vld [vmem:[#allocation2 + $0x250] sm:$0xff]
    %v98 = vld [vmem:[#allocation2 + $0x258] sm:$0xff]
    %v99 = vld [vmem:[#allocation2 + $0x260] sm:$0xff]
    %v100 = vld [vmem:[#allocation2 + $0x268] sm:$0xff]
    %v101 = vld [vmem:[#allocation2 + $0x270] sm:$0xff]
    %v102 = vld [vmem:[#allocation2 + $0x278] sm:$0xff]
    %v103 = vld [vmem:[#allocation2 + $0x280] sm:$0xff]
    %v104 = vld [vmem:[#allocation2 + $0x288] sm:$0xff]
    %v105 = vld [vmem:[#allocation2 + $0x290] sm:$0xff]
    %v106 = vld [vmem:[#allocation2 + $0x298] sm:$0xff]
    %v107 = vld [vmem:[#allocation2 + $0x2a0] sm:$0xff]
    %v108 = vld [vmem:[#allocation2 + $0x2a8] sm:$0xff]
    %v109 = vld [vmem:[#allocation2 + $0x2b0] sm:$0xff]
    %v110 = vld [vmem:[#allocation2 + $0x2b8] sm:$0xff]
    %v111 = vld [vmem:[#allocation2 + $0x2c0] sm:$0xff]
    %v112 = vld [vmem:[#allocation2 + $0x2c8] sm:$0xff]
    %v113 = vld [vmem:[#allocation2 + $0x2d0] sm:$0xff]
    %v114 = vld [vmem:[#allocation2 + $0x2d8] sm:$0xff]
    %v115 = vld [vmem:[#allocation2 + $0x2e0] sm:$0xff]
    %v116 = vld [vmem:[#allocation2 + $0x2e8] sm:$0xff]
    %v117 = vld [vmem:[#allocation2 + $0x2f0] sm:$0xff]
    %v118 = vld [vmem:[#allocation2 + $0x2f8] sm:$0xff]
    %v119 = vld [vmem:[#allocation2 + $0x300] sm:$0xff]
    %v120 = vld [vmem:[#allocation2 + $0x308] sm:$0xff]
    %v121 = vld [vmem:[#allocation2 + $0x310] sm:$0xff]
    %v122 = vld [vmem:[#allocation2 + $0x318] sm:$0xff]
    %v123 = vld [vmem:[#allocation2 + $0x320] sm:$0xff]
    %v124 = vld [vmem:[#allocation2 + $0x328] sm:$0xff]
    %v125 = vld [vmem:[#allocation2 + $0x330] sm:$0xff]
    %v126 = vld [vmem:[#allocation2 + $0x338] sm:$0xff]
    %v127 = vld [vmem:[#allocation2 + $0x340] sm:$0xff]
    %v128 = vld [vmem:[#allocation2 + $0x348] sm:$0xff]
    %v129 = vld [vmem:[#allocation2 + $0x350] sm:$0xff]
    %v130 = vld [vmem:[#allocation2 + $0x358] sm:$0xff]
    %v131 = vld [vmem:[#allocation2 + $0x360] sm:$0xff]
    %v132 = vld [vmem:[#allocation2 + $0x368] sm:$0xff]
    %v133 = vld [vmem:[#allocation2 + $0x370] sm:$0xff]
    %v134 = vld [vmem:[#allocation2 + $0x378] sm:$0xff]
    %v135 = vld [vmem:[#allocation2 + $0x380] sm:$0xff]
    %v136 = vld [vmem:[#allocation2 + $0x388] sm:$0xff]
    %v137 = vld [vmem:[#allocation2 + $0x390] sm:$0xff]
    %v138 = vld [vmem:[#allocation2 + $0x398] sm:$0xff]
    %v139 = vld [vmem:[#allocation2 + $0x3a0] sm:$0xff]
    %v140 = vld [vmem:[#allocation2 + $0x3a8] sm:$0xff]
    %v141 = vld [vmem:[#allocation2 + $0x3b0] sm:$0xff]
    %v142 = vld [vmem:[#allocation2 + $0x3b8] sm:$0xff]
    %v143 = vld [vmem:[#allocation2 + $0x3c0] sm:$0xff]
    %v144 = vld [vmem:[#allocation2 + $0x3c8] sm:$0xff]
    %v145 = vld [vmem:[#allocation2 + $0x3d0] sm:$0xff]
    %v146 = vld [vmem:[#allocation2 + $0x3d8] sm:$0xff]
    %v147 = vld [vmem:[#allocation2 + $0x3e0] sm:$0xff]
    %v148 = vld [vmem:[#allocation2 + $0x3e8] sm:$0xff]
    %v149 = vld [vmem:[#allocation2 + $0x3f0] sm:$0xff]
    %v150 = vld [vmem:[#allocation2 + $0x3f8] sm:$0xff]
    %151 = vxpose.xlu0.b32.start [1/16] %v23, 128
    %152 = vxpose.xlu0.b32.cont [2/16] %v24, 128
    %153 = vxpose.xlu0.b32.cont [3/16] %v25, 128
    %154 = vxpose.xlu0.b32.cont [4/16] %v26, 128
    %155 = vxpose.xlu0.b32.cont [5/16] %v27, 128
    %156 = vxpose.xlu0.b32.cont [6/16] %v28, 128
    %157 = vxpose.xlu0.b32.cont [7/16] %v29, 128
    %158 = vxpose.xlu0.b32.cont [8/16] %v30, 128
    %159 = vxpose.xlu0.b32.cont [9/16] %v31, 128
    %160 = vxpose.xlu0.b32.cont [10/16] %v32, 128
    %161 = vxpose.xlu0.b32.cont [11/16] %v33, 128
    %162 = vxpose.xlu0.b32.cont [12/16] %v34, 128
    %163 = vxpose.xlu0.b32.cont [13/16] %v35, 128
    %164 = vxpose.xlu0.b32.cont [14/16] %v36, 128
    %165 = vxpose.xlu0.b32.cont [15/16] %v37, 128
    %166 = vxpose.xlu0.b32.end [16/16] %v38, 128
    %v167 = vpop.trf.xlu0
    %v168 = vpop.trf.xlu0
    %v169 = vpop.trf.xlu0
    %v170 = vpop.trf.xlu0
    %v171 = vpop.trf.xlu0
    %v172 = vpop.trf.xlu0
    %v173 = vpop.trf.xlu0
    %v174 = vpop.trf.xlu0
    %v175 = vpop.trf.xlu0
    %v176 = vpop.trf.xlu0
    %v177 = vpop.trf.xlu0
    %v178 = vpop.trf.xlu0
    %v179 = vpop.trf.xlu0
    %v180 = vpop.trf.xlu0
    %v181 = vpop.trf.xlu0
    %v182 = vpop.trf.xlu0
    %183 = vxpose.xlu0.b32.start [1/16] %v39, 128
    %184 = vxpose.xlu0.b32.cont [2/16] %v40, 128
    %185 = vxpose.xlu0.b32.cont [3/16] %v41, 128
    %186 = vxpose.xlu0.b32.cont [4/16] %v42, 128
    %187 = vxpose.xlu0.b32.cont [5/16] %v43, 128
    %188 = vxpose.xlu0.b32.cont [6/16] %v44, 128
    %189 = vxpose.xlu0.b32.cont [7/16] %v45, 128
    %190 = vxpose.xlu0.b32.cont [8/16] %v46, 128
    %191 = vxpose.xlu0.b32.cont [9/16] %v47, 128
    %192 = vxpose.xlu0.b32.cont [10/16] %v48, 128
    %193 = vxpose.xlu0.b32.cont [11/16] %v49, 128
    %194 = vxpose.xlu0.b32.cont [12/16] %v50, 128
    %195 = vxpose.xlu0.b32.cont [13/16] %v51, 128
    %196 = vxpose.xlu0.b32.cont [14/16] %v52, 128
    %197 = vxpose.xlu0.b32.cont [15/16] %v53, 128
    %198 = vxpose.xlu0.b32.end [16/16] %v54, 128
    %v199 = vpop.trf.xlu0
    %v200 = vpop.trf.xlu0
    %v201 = vpop.trf.xlu0
    %v202 = vpop.trf.xlu0
    %v203 = vpop.trf.xlu0
    %v204 = vpop.trf.xlu0
    %v205 = vpop.trf.xlu0
    %v206 = vpop.trf.xlu0
    %v207 = vpop.trf.xlu0
    %v208 = vpop.trf.xlu0
    %v209 = vpop.trf.xlu0
    %v210 = vpop.trf.xlu0
    %v211 = vpop.trf.xlu0
    %v212 = vpop.trf.xlu0
    %v213 = vpop.trf.xlu0
    %v214 = vpop.trf.xlu0
    %215 = vxpose.xlu0.b32.start [1/16] %v55, 128
    %216 = vxpose.xlu0.b32.cont [2/16] %v56, 128
    %217 = vxpose.xlu0.b32.cont [3/16] %v57, 128
    %218 = vxpose.xlu0.b32.cont [4/16] %v58, 128
    %219 = vxpose.xlu0.b32.cont [5/16] %v59, 128
    %220 = vxpose.xlu0.b32.cont [6/16] %v60, 128
    %221 = vxpose.xlu0.b32.cont [7/16] %v61, 128
    %222 = vxpose.xlu0.b32.cont [8/16] %v62, 128
    %223 = vxpose.xlu0.b32.cont [9/16] %v63, 128
    %224 = vxpose.xlu0.b32.cont [10/16] %v64, 128
    %225 = vxpose.xlu0.b32.cont [11/16] %v65, 128
    %226 = vxpose.xlu0.b32.cont [12/16] %v66, 128
    %227 = vxpose.xlu0.b32.cont [13/16] %v67, 128
    %228 = vxpose.xlu0.b32.cont [14/16] %v68, 128
    %229 = vxpose.xlu0.b32.cont [15/16] %v69, 128
    %230 = vxpose.xlu0.b32.end [16/16] %v70, 128
    %v231 = vpop.trf.xlu0
    %v232 = vpop.trf.xlu0
    %v233 = vpop.trf.xlu0
    %v234 = vpop.trf.xlu0
    %v235 = vpop.trf.xlu0
    %v236 = vpop.trf.xlu0
    %v237 = vpop.trf.xlu0
    %v238 = vpop.trf.xlu0
    %v239 = vpop.trf.xlu0
    %v240 = vpop.trf.xlu0
    %v241 = vpop.trf.xlu0
    %v242 = vpop.trf.xlu0
    %v243 = vpop.trf.xlu0
    %v244 = vpop.trf.xlu0
    %v245 = vpop.trf.xlu0
    %v246 = vpop.trf.xlu0
    %247 = vxpose.xlu0.b32.start [1/16] %v71, 128
    %248 = vxpose.xlu0.b32.cont [2/16] %v72, 128
    %249 = vxpose.xlu0.b32.cont [3/16] %v73, 128
    %250 = vxpose.xlu0.b32.cont [4/16] %v74, 128
    %251 = vxpose.xlu0.b32.cont [5/16] %v75, 128
    %252 = vxpose.xlu0.b32.cont [6/16] %v76, 128
    %253 = vxpose.xlu0.b32.cont [7/16] %v77, 128
    %254 = vxpose.xlu0.b32.cont [8/16] %v78, 128
    %255 = vxpose.xlu0.b32.cont [9/16] %v79, 128
    %256 = vxpose.xlu0.b32.cont [10/16] %v80, 128
    %257 = vxpose.xlu0.b32.cont [11/16] %v81, 128
    %258 = vxpose.xlu0.b32.cont [12/16] %v82, 128
    %259 = vxpose.xlu0.b32.cont [13/16] %v83, 128
    %260 = vxpose.xlu0.b32.cont [14/16] %v84, 128
    %261 = vxpose.xlu0.b32.cont [15/16] %v85, 128
    %262 = vxpose.xlu0.b32.end [16/16] %v86, 128
    %v263 = vpop.trf.xlu0
    %v264 = vpop.trf.xlu0
    %v265 = vpop.trf.xlu0
    %v266 = vpop.trf.xlu0
    %v267 = vpop.trf.xlu0
    %v268 = vpop.trf.xlu0
    %v269 = vpop.trf.xlu0
    %v270 = vpop.trf.xlu0
    %v271 = vpop.trf.xlu0
    %v272 = vpop.trf.xlu0
    %v273 = vpop.trf.xlu0
    %v274 = vpop.trf.xlu0
    %v275 = vpop.trf.xlu0
    %v276 = vpop.trf.xlu0
    %v277 = vpop.trf.xlu0
    %v278 = vpop.trf.xlu0
    %279 = vxpose.xlu0.b32.start [1/16] %v87, 128
    %280 = vxpose.xlu0.b32.cont [2/16] %v88, 128
    %281 = vxpose.xlu0.b32.cont [3/16] %v89, 128
    %282 = vxpose.xlu0.b32.cont [4/16] %v90, 128
    %283 = vxpose.xlu0.b32.cont [5/16] %v91, 128
    %284 = vxpose.xlu0.b32.cont [6/16] %v92, 128
    %285 = vxpose.xlu0.b32.cont [7/16] %v93, 128
    %286 = vxpose.xlu0.b32.cont [8/16] %v94, 128
    %287 = vxpose.xlu0.b32.cont [9/16] %v95, 128
    %288 = vxpose.xlu0.b32.cont [10/16] %v96, 128
    %289 = vxpose.xlu0.b32.cont [11/16] %v97, 128
    %290 = vxpose.xlu0.b32.cont [12/16] %v98, 128
    %291 = vxpose.xlu0.b32.cont [13/16] %v99, 128
    %292 = vxpose.xlu0.b32.cont [14/16] %v100, 128
    %293 = vxpose.xlu0.b32.cont [15/16] %v101, 128
    %294 = vxpose.xlu0.b32.end [16/16] %v102, 128
    %v295 = vpop.trf.xlu0
    %v296 = vpop.trf.xlu0
    %v297 = vpop.trf.xlu0
    %v298 = vpop.trf.xlu0
    %v299 = vpop.trf.xlu0
    %v300 = vpop.trf.xlu0
    %v301 = vpop.trf.xlu0
    %v302 = vpop.trf.xlu0
    %v303 = vpop.trf.xlu0
    %v304 = vpop.trf.xlu0
    %v305 = vpop.trf.xlu0
    %v306 = vpop.trf.xlu0
    %v307 = vpop.trf.xlu0
    %v308 = vpop.trf.xlu0
    %v309 = vpop.trf.xlu0
    %v310 = vpop.trf.xlu0
    %311 = vxpose.xlu0.b32.start [1/16] %v103, 128
    %312 = vxpose.xlu0.b32.cont [2/16] %v104, 128
    %313 = vxpose.xlu0.b32.cont [3/16] %v105, 128
    %314 = vxpose.xlu0.b32.cont [4/16] %v106, 128
    %315 = vxpose.xlu0.b32.cont [5/16] %v107, 128
    %316 = vxpose.xlu0.b32.cont [6/16] %v108, 128
    %317 = vxpose.xlu0.b32.cont [7/16] %v109, 128
    %318 = vxpose.xlu0.b32.cont [8/16] %v110, 128
    %319 = vxpose.xlu0.b32.cont [9/16] %v111, 128
    %320 = vxpose.xlu0.b32.cont [10/16] %v112, 128
    %321 = vxpose.xlu0.b32.cont [11/16] %v113, 128
    %322 = vxpose.xlu0.b32.cont [12/16] %v114, 128
    %323 = vxpose.xlu0.b32.cont [13/16] %v115, 128
    %324 = vxpose.xlu0.b32.cont [14/16] %v116, 128
    %325 = vxpose.xlu0.b32.cont [15/16] %v117, 128
    %326 = vxpose.xlu0.b32.end [16/16] %v118, 128
    %v327 = vpop.trf.xlu0
    %v328 = vpop.trf.xlu0
    %v329 = vpop.trf.xlu0
    %v330 = vpop.trf.xlu0
    %v331 = vpop.trf.xlu0
    %v332 = vpop.trf.xlu0
    %v333 = vpop.trf.xlu0
    %v334 = vpop.trf.xlu0
    %v335 = vpop.trf.xlu0
    %v336 = vpop.trf.xlu0
    %v337 = vpop.trf.xlu0
    %v338 = vpop.trf.xlu0
    %v339 = vpop.trf.xlu0
    %v340 = vpop.trf.xlu0
    %v341 = vpop.trf.xlu0
    %v342 = vpop.trf.xlu0
    %343 = vxpose.xlu0.b32.start [1/16] %v119, 128
    %344 = vxpose.xlu0.b32.cont [2/16] %v120, 128
    %345 = vxpose.xlu0.b32.cont [3/16] %v121, 128
    %346 = vxpose.xlu0.b32.cont [4/16] %v122, 128
    %347 = vxpose.xlu0.b32.cont [5/16] %v123, 128
    %348 = vxpose.xlu0.b32.cont [6/16] %v124, 128
    %349 = vxpose.xlu0.b32.cont [7/16] %v125, 128
    %350 = vxpose.xlu0.b32.cont [8/16] %v126, 128
    %351 = vxpose.xlu0.b32.cont [9/16] %v127, 128
    %352 = vxpose.xlu0.b32.cont [10/16] %v128, 128
    %353 = vxpose.xlu0.b32.cont [11/16] %v129, 128
    %354 = vxpose.xlu0.b32.cont [12/16] %v130, 128
    %355 = vxpose.xlu0.b32.cont [13/16] %v131, 128
    %356 = vxpose.xlu0.b32.cont [14/16] %v132, 128
    %357 = vxpose.xlu0.b32.cont [15/16] %v133, 128
    %358 = vxpose.xlu0.b32.end [16/16] %v134, 128
    %v359 = vpop.trf.xlu0
    %v360 = vpop.trf.xlu0
    %v361 = vpop.trf.xlu0
    %v362 = vpop.trf.xlu0
    %v363 = vpop.trf.xlu0
    %v364 = vpop.trf.xlu0
    %v365 = vpop.trf.xlu0
    %v366 = vpop.trf.xlu0
    %v367 = vpop.trf.xlu0
    %v368 = vpop.trf.xlu0
    %v369 = vpop.trf.xlu0
    %v370 = vpop.trf.xlu0
    %v371 = vpop.trf.xlu0
    %v372 = vpop.trf.xlu0
    %v373 = vpop.trf.xlu0
    %v374 = vpop.trf.xlu0
    %375 = vxpose.xlu0.b32.start [1/16] %v135, 128
    %376 = vxpose.xlu0.b32.cont [2/16] %v136, 128
    %377 = vxpose.xlu0.b32.cont [3/16] %v137, 128
    %378 = vxpose.xlu0.b32.cont [4/16] %v138, 128
    %379 = vxpose.xlu0.b32.cont [5/16] %v139, 128
    %380 = vxpose.xlu0.b32.cont [6/16] %v140, 128
    %381 = vxpose.xlu0.b32.cont [7/16] %v141, 128
    %382 = vxpose.xlu0.b32.cont [8/16] %v142, 128
    %383 = vxpose.xlu0.b32.cont [9/16] %v143, 128
    %384 = vxpose.xlu0.b32.cont [10/16] %v144, 128
    %385 = vxpose.xlu0.b32.cont [11/16] %v145, 128
    %386 = vxpose.xlu0.b32.cont [12/16] %v146, 128
    %387 = vxpose.xlu0.b32.cont [13/16] %v147, 128
    %388 = vxpose.xlu0.b32.cont [14/16] %v148, 128
    %389 = vxpose.xlu0.b32.cont [15/16] %v149, 128
    %390 = vxpose.xlu0.b32.end [16/16] %v150, 128
    %v391 = vpop.trf.xlu0
    %v392 = vpop.trf.xlu0
    %v393 = vpop.trf.xlu0
    %v394 = vpop.trf.xlu0
    %v395 = vpop.trf.xlu0
    %v396 = vpop.trf.xlu0
    %v397 = vpop.trf.xlu0
    %v398 = vpop.trf.xlu0
    %v399 = vpop.trf.xlu0
    %v400 = vpop.trf.xlu0
    %v401 = vpop.trf.xlu0
    %v402 = vpop.trf.xlu0
    %v403 = vpop.trf.xlu0
    %v404 = vpop.trf.xlu0
    %v405 = vpop.trf.xlu0
    %v406 = vpop.trf.xlu0
    %407 = vst [vmem:[#allocation5] sm:$0xff] %v167
    %408 = vst [vmem:[#allocation5 + $0x8] sm:$0xff] %v199
    %409 = vst [vmem:[#allocation5 + $0x10] sm:$0xff] %v231
    %410 = vst [vmem:[#allocation5 + $0x18] sm:$0xff] %v263
    %411 = vst [vmem:[#allocation5 + $0x20] sm:$0xff] %v295
    %412 = vst [vmem:[#allocation5 + $0x28] sm:$0xff] %v327
    %413 = vst [vmem:[#allocation5 + $0x30] sm:$0xff] %v359
    %414 = vst [vmem:[#allocation5 + $0x38] sm:$0xff] %v391
    %415 = vst [vmem:[#allocation5 + $0x40] sm:$0xff] %v168
    %416 = vst [vmem:[#allocation5 + $0x48] sm:$0xff] %v200
    %417 = vst [vmem:[#allocation5 + $0x50] sm:$0xff] %v232
    %418 = vst [vmem:[#allocation5 + $0x58] sm:$0xff] %v264
    %419 = vst [vmem:[#allocation5 + $0x60] sm:$0xff] %v296
    %420 = vst [vmem:[#allocation5 + $0x68] sm:$0xff] %v328
    %421 = vst [vmem:[#allocation5 + $0x70] sm:$0xff] %v360
    %422 = vst [vmem:[#allocation5 + $0x78] sm:$0xff] %v392
    %423 = vst [vmem:[#allocation5 + $0x80] sm:$0xff] %v169
    %424 = vst [vmem:[#allocation5 + $0x88] sm:$0xff] %v201
    %425 = vst [vmem:[#allocation5 + $0x90] sm:$0xff] %v233
    %426 = vst [vmem:[#allocation5 + $0x98] sm:$0xff] %v265
    %427 = vst [vmem:[#allocation5 + $0xa0] sm:$0xff] %v297
    %428 = vst [vmem:[#allocation5 + $0xa8] sm:$0xff] %v329
    %429 = vst [vmem:[#allocation5 + $0xb0] sm:$0xff] %v361
    %430 = vst [vmem:[#allocation5 + $0xb8] sm:$0xff] %v393
    %431 = vst [vmem:[#allocation5 + $0xc0] sm:$0xff] %v170
    %432 = vst [vmem:[#allocation5 + $0xc8] sm:$0xff] %v202
    %433 = vst [vmem:[#allocation5 + $0xd0] sm:$0xff] %v234
    %434 = vst [vmem:[#allocation5 + $0xd8] sm:$0xff] %v266
    %435 = vst [vmem:[#allocation5 + $0xe0] sm:$0xff] %v298
    %436 = vst [vmem:[#allocation5 + $0xe8] sm:$0xff] %v330
    %437 = vst [vmem:[#allocation5 + $0xf0] sm:$0xff] %v362
    %438 = vst [vmem:[#allocation5 + $0xf8] sm:$0xff] %v394
    %439 = vst [vmem:[#allocation5 + $0x100] sm:$0xff] %v171
    %440 = vst [vmem:[#allocation5 + $0x108] sm:$0xff] %v203
    %441 = vst [vmem:[#allocation5 + $0x110] sm:$0xff] %v235
    %442 = vst [vmem:[#allocation5 + $0x118] sm:$0xff] %v267
    %443 = vst [vmem:[#allocation5 + $0x120] sm:$0xff] %v299
    %444 = vst [vmem:[#allocation5 + $0x128] sm:$0xff] %v331
    %445 = vst [vmem:[#allocation5 + $0x130] sm:$0xff] %v363
    %446 = vst [vmem:[#allocation5 + $0x138] sm:$0xff] %v395
    %447 = vst [vmem:[#allocation5 + $0x140] sm:$0xff] %v172
    %448 = vst [vmem:[#allocation5 + $0x148] sm:$0xff] %v204
    %449 = vst [vmem:[#allocation5 + $0x150] sm:$0xff] %v236
    %450 = vst [vmem:[#allocation5 + $0x158] sm:$0xff] %v268
    %451 = vst [vmem:[#allocation5 + $0x160] sm:$0xff] %v300
    %452 = vst [vmem:[#allocation5 + $0x168] sm:$0xff] %v332
    %453 = vst [vmem:[#allocation5 + $0x170] sm:$0xff] %v364
    %454 = vst [vmem:[#allocation5 + $0x178] sm:$0xff] %v396
    %455 = vst [vmem:[#allocation5 + $0x180] sm:$0xff] %v173
    %456 = vst [vmem:[#allocation5 + $0x188] sm:$0xff] %v205
    %457 = vst [vmem:[#allocation5 + $0x190] sm:$0xff] %v237
    %458 = vst [vmem:[#allocation5 + $0x198] sm:$0xff] %v269
    %459 = vst [vmem:[#allocation5 + $0x1a0] sm:$0xff] %v301
    %460 = vst [vmem:[#allocation5 + $0x1a8] sm:$0xff] %v333
    %461 = vst [vmem:[#allocation5 + $0x1b0] sm:$0xff] %v365
    %462 = vst [vmem:[#allocation5 + $0x1b8] sm:$0xff] %v397
    %463 = vst [vmem:[#allocation5 + $0x1c0] sm:$0xff] %v174
    %464 = vst [vmem:[#allocation5 + $0x1c8] sm:$0xff] %v206
    %465 = vst [vmem:[#allocation5 + $0x1d0] sm:$0xff] %v238
    %466 = vst [vmem:[#allocation5 + $0x1d8] sm:$0xff] %v270
    %467 = vst [vmem:[#allocation5 + $0x1e0] sm:$0xff] %v302
    %468 = vst [vmem:[#allocation5 + $0x1e8] sm:$0xff] %v334
    %469 = vst [vmem:[#allocation5 + $0x1f0] sm:$0xff] %v366
    %470 = vst [vmem:[#allocation5 + $0x1f8] sm:$0xff] %v398
    %471 = vst [vmem:[#allocation5 + $0x200] sm:$0xff] %v175
    %472 = vst [vmem:[#allocation5 + $0x208] sm:$0xff] %v207
    %473 = vst [vmem:[#allocation5 + $0x210] sm:$0xff] %v239
    %474 = vst [vmem:[#allocation5 + $0x218] sm:$0xff] %v271
    %475 = vst [vmem:[#allocation5 + $0x220] sm:$0xff] %v303
    %476 = vst [vmem:[#allocation5 + $0x228] sm:$0xff] %v335
    %477 = vst [vmem:[#allocation5 + $0x230] sm:$0xff] %v367
    %478 = vst [vmem:[#allocation5 + $0x238] sm:$0xff] %v399
    %479 = vst [vmem:[#allocation5 + $0x240] sm:$0xff] %v176
    %480 = vst [vmem:[#allocation5 + $0x248] sm:$0xff] %v208
    %481 = vst [vmem:[#allocation5 + $0x250] sm:$0xff] %v240
    %482 = vst [vmem:[#allocation5 + $0x258] sm:$0xff] %v272
    %483 = vst [vmem:[#allocation5 + $0x260] sm:$0xff] %v304
    %484 = vst [vmem:[#allocation5 + $0x268] sm:$0xff] %v336
    %485 = vst [vmem:[#allocation5 + $0x270] sm:$0xff] %v368
    %486 = vst [vmem:[#allocation5 + $0x278] sm:$0xff] %v400
    %487 = vst [vmem:[#allocation5 + $0x280] sm:$0xff] %v177
    %488 = vst [vmem:[#allocation5 + $0x288] sm:$0xff] %v209
    %489 = vst [vmem:[#allocation5 + $0x290] sm:$0xff] %v241
    %490 = vst [vmem:[#allocation5 + $0x298] sm:$0xff] %v273
    %491 = vst [vmem:[#allocation5 + $0x2a0] sm:$0xff] %v305
    %492 = vst [vmem:[#allocation5 + $0x2a8] sm:$0xff] %v337
    %493 = vst [vmem:[#allocation5 + $0x2b0] sm:$0xff] %v369
    %494 = vst [vmem:[#allocation5 + $0x2b8] sm:$0xff] %v401
    %495 = vst [vmem:[#allocation5 + $0x2c0] sm:$0xff] %v178
    %496 = vst [vmem:[#allocation5 + $0x2c8] sm:$0xff] %v210
    %497 = vst [vmem:[#allocation5 + $0x2d0] sm:$0xff] %v242
    %498 = vst [vmem:[#allocation5 + $0x2d8] sm:$0xff] %v274
    %499 = vst [vmem:[#allocation5 + $0x2e0] sm:$0xff] %v306
    %500 = vst [vmem:[#allocation5 + $0x2e8] sm:$0xff] %v338
    %501 = vst [vmem:[#allocation5 + $0x2f0] sm:$0xff] %v370
    %502 = vst [vmem:[#allocation5 + $0x2f8] sm:$0xff] %v402
    %503 = vst [vmem:[#allocation5 + $0x300] sm:$0xff] %v179
    %504 = vst [vmem:[#allocation5 + $0x308] sm:$0xff] %v211
    %505 = vst [vmem:[#allocation5 + $0x310] sm:$0xff] %v243
    %506 = vst [vmem:[#allocation5 + $0x318] sm:$0xff] %v275
    %507 = vst [vmem:[#allocation5 + $0x320] sm:$0xff] %v307
    %508 = vst [vmem:[#allocation5 + $0x328] sm:$0xff] %v339
    %509 = vst [vmem:[#allocation5 + $0x330] sm:$0xff] %v371
    %510 = vst [vmem:[#allocation5 + $0x338] sm:$0xff] %v403
    %511 = vst [vmem:[#allocation5 + $0x340] sm:$0xff] %v180
    %512 = vst [vmem:[#allocation5 + $0x348] sm:$0xff] %v212
    %513 = vst [vmem:[#allocation5 + $0x350] sm:$0xff] %v244
    %514 = vst [vmem:[#allocation5 + $0x358] sm:$0xff] %v276
    %515 = vst [vmem:[#allocation5 + $0x360] sm:$0xff] %v308
    %516 = vst [vmem:[#allocation5 + $0x368] sm:$0xff] %v340
    %517 = vst [vmem:[#allocation5 + $0x370] sm:$0xff] %v372
    %518 = vst [vmem:[#allocation5 + $0x378] sm:$0xff] %v404
    %519 = vst [vmem:[#allocation5 + $0x380] sm:$0xff] %v181
    %520 = vst [vmem:[#allocation5 + $0x388] sm:$0xff] %v213
    %521 = vst [vmem:[#allocation5 + $0x390] sm:$0xff] %v245
    %522 = vst [vmem:[#allocation5 + $0x398] sm:$0xff] %v277
    %523 = vst [vmem:[#allocation5 + $0x3a0] sm:$0xff] %v309
    %524 = vst [vmem:[#allocation5 + $0x3a8] sm:$0xff] %v341
    %525 = vst [vmem:[#allocation5 + $0x3b0] sm:$0xff] %v373
    %526 = vst [vmem:[#allocation5 + $0x3b8] sm:$0xff] %v405
    %527 = vst [vmem:[#allocation5 + $0x3c0] sm:$0xff] %v182
    %528 = vst [vmem:[#allocation5 + $0x3c8] sm:$0xff] %v214
    %529 = vst [vmem:[#allocation5 + $0x3d0] sm:$0xff] %v246
    %530 = vst [vmem:[#allocation5 + $0x3d8] sm:$0xff] %v278
    %531 = vst [vmem:[#allocation5 + $0x3e0] sm:$0xff] %v310
    %532 = vst [vmem:[#allocation5 + $0x3e8] sm:$0xff] %v342
    %533 = vst [vmem:[#allocation5 + $0x3f0] sm:$0xff] %v374
    %534 = vst [vmem:[#allocation5 + $0x3f8] sm:$0xff] %v406
    %s535 = scalar_lea.vmem [#allocation2], 1024
    %v536 = vld [vmem:[%s535] sm:$0xff]
    %v537 = vld [vmem:[%s535 + $0x8] sm:$0xff]
    %v538 = vld [vmem:[%s535 + $0x10] sm:$0xff]
    %v539 = vld [vmem:[%s535 + $0x18] sm:$0xff]
    %v540 = vld [vmem:[%s535 + $0x20] sm:$0xff]
    %v541 = vld [vmem:[%s535 + $0x28] sm:$0xff]
    %v542 = vld [vmem:[%s535 + $0x30] sm:$0xff]
    %v543 = vld [vmem:[%s535 + $0x38] sm:$0xff]
    %v544 = vld [vmem:[%s535 + $0x40] sm:$0xff]
    %v545 = vld [vmem:[%s535 + $0x48] sm:$0xff]
    %v546 = vld [vmem:[%s535 + $0x50] sm:$0xff]
    %v547 = vld [vmem:[%s535 + $0x58] sm:$0xff]
    %v548 = vld [vmem:[%s535 + $0x60] sm:$0xff]
    %v549 = vld [vmem:[%s535 + $0x68] sm:$0xff]
    %v550 = vld [vmem:[%s535 + $0x70] sm:$0xff]
    %v551 = vld [vmem:[%s535 + $0x78] sm:$0xff]
    %v552 = vld [vmem:[%s535 + $0x80] sm:$0xff]
    %v553 = vld [vmem:[%s535 + $0x88] sm:$0xff]
    %v554 = vld [vmem:[%s535 + $0x90] sm:$0xff]
    %v555 = vld [vmem:[%s535 + $0x98] sm:$0xff]
    %v556 = vld [vmem:[%s535 + $0xa0] sm:$0xff]
    %v557 = vld [vmem:[%s535 + $0xa8] sm:$0xff]
    %v558 = vld [vmem:[%s535 + $0xb0] sm:$0xff]
    %v559 = vld [vmem:[%s535 + $0xb8] sm:$0xff]
    %v560 = vld [vmem:[%s535 + $0xc0] sm:$0xff]
    %v561 = vld [vmem:[%s535 + $0xc8] sm:$0xff]
    %v562 = vld [vmem:[%s535 + $0xd0] sm:$0xff]
    %v563 = vld [vmem:[%s535 + $0xd8] sm:$0xff]
    %v564 = vld [vmem:[%s535 + $0xe0] sm:$0xff]
    %v565 = vld [vmem:[%s535 + $0xe8] sm:$0xff]
    %v566 = vld [vmem:[%s535 + $0xf0] sm:$0xff]
    %v567 = vld [vmem:[%s535 + $0xf8] sm:$0xff]
    %v568 = vld [vmem:[%s535 + $0x100] sm:$0xff]
    %v569 = vld [vmem:[%s535 + $0x108] sm:$0xff]
    %v570 = vld [vmem:[%s535 + $0x110] sm:$0xff]
    %v571 = vld [vmem:[%s535 + $0x118] sm:$0xff]
    %v572 = vld [vmem:[%s535 + $0x120] sm:$0xff]
    %v573 = vld [vmem:[%s535 + $0x128] sm:$0xff]
    %v574 = vld [vmem:[%s535 + $0x130] sm:$0xff]
    %v575 = vld [vmem:[%s535 + $0x138] sm:$0xff]
    %v576 = vld [vmem:[%s535 + $0x140] sm:$0xff]
    %v577 = vld [vmem:[%s535 + $0x148] sm:$0xff]
    %v578 = vld [vmem:[%s535 + $0x150] sm:$0xff]
    %v579 = vld [vmem:[%s535 + $0x158] sm:$0xff]
    %v580 = vld [vmem:[%s535 + $0x160] sm:$0xff]
    %v581 = vld [vmem:[%s535 + $0x168] sm:$0xff]
    %v582 = vld [vmem:[%s535 + $0x170] sm:$0xff]
    %v583 = vld [vmem:[%s535 + $0x178] sm:$0xff]
    %v584 = vld [vmem:[%s535 + $0x180] sm:$0xff]
    %v585 = vld [vmem:[%s535 + $0x188] sm:$0xff]
    %v586 = vld [vmem:[%s535 + $0x190] sm:$0xff]
    %v587 = vld [vmem:[%s535 + $0x198] sm:$0xff]
    %v588 = vld [vmem:[%s535 + $0x1a0] sm:$0xff]
    %v589 = vld [vmem:[%s535 + $0x1a8] sm:$0xff]
    %v590 = vld [vmem:[%s535 + $0x1b0] sm:$0xff]
    %v591 = vld [vmem:[%s535 + $0x1b8] sm:$0xff]
    %v592 = vld [vmem:[%s535 + $0x1c0] sm:$0xff]
    %v593 = vld [vmem:[%s535 + $0x1c8] sm:$0xff]
    %v594 = vld [vmem:[%s535 + $0x1d0] sm:$0xff]
    %v595 = vld [vmem:[%s535 + $0x1d8] sm:$0xff]
    %v596 = vld [vmem:[%s535 + $0x1e0] sm:$0xff]
    %v597 = vld [vmem:[%s535 + $0x1e8] sm:$0xff]
    %v598 = vld [vmem:[%s535 + $0x1f0] sm:$0xff]
    %v599 = vld [vmem:[%s535 + $0x1f8] sm:$0xff]
    %v600 = vld [vmem:[%s535 + $0x200] sm:$0xff]
    %v601 = vld [vmem:[%s535 + $0x208] sm:$0xff]
    %v602 = vld [vmem:[%s535 + $0x210] sm:$0xff]
    %v603 = vld [vmem:[%s535 + $0x218] sm:$0xff]
    %v604 = vld [vmem:[%s535 + $0x220] sm:$0xff]
    %v605 = vld [vmem:[%s535 + $0x228] sm:$0xff]
    %v606 = vld [vmem:[%s535 + $0x230] sm:$0xff]
    %v607 = vld [vmem:[%s535 + $0x238] sm:$0xff]
    %v608 = vld [vmem:[%s535 + $0x240] sm:$0xff]
    %v609 = vld [vmem:[%s535 + $0x248] sm:$0xff]
    %v610 = vld [vmem:[%s535 + $0x250] sm:$0xff]
    %v611 = vld [vmem:[%s535 + $0x258] sm:$0xff]
    %v612 = vld [vmem:[%s535 + $0x260] sm:$0xff]
    %v613 = vld [vmem:[%s535 + $0x268] sm:$0xff]
    %v614 = vld [vmem:[%s535 + $0x270] sm:$0xff]
    %v615 = vld [vmem:[%s535 + $0x278] sm:$0xff]
    %v616 = vld [vmem:[%s535 + $0x280] sm:$0xff]
    %v617 = vld [vmem:[%s535 + $0x288] sm:$0xff]
    %v618 = vld [vmem:[%s535 + $0x290] sm:$0xff]
    %v619 = vld [vmem:[%s535 + $0x298] sm:$0xff]
    %v620 = vld [vmem:[%s535 + $0x2a0] sm:$0xff]
    %v621 = vld [vmem:[%s535 + $0x2a8] sm:$0xff]
    %v622 = vld [vmem:[%s535 + $0x2b0] sm:$0xff]
    %v623 = vld [vmem:[%s535 + $0x2b8] sm:$0xff]
    %v624 = vld [vmem:[%s535 + $0x2c0] sm:$0xff]
    %v625 = vld [vmem:[%s535 + $0x2c8] sm:$0xff]
    %v626 = vld [vmem:[%s535 + $0x2d0] sm:$0xff]
    %v627 = vld [vmem:[%s535 + $0x2d8] sm:$0xff]
    %v628 = vld [vmem:[%s535 + $0x2e0] sm:$0xff]
    %v629 = vld [vmem:[%s535 + $0x2e8] sm:$0xff]
    %v630 = vld [vmem:[%s535 + $0x2f0] sm:$0xff]
    %v631 = vld [vmem:[%s535 + $0x2f8] sm:$0xff]
    %v632 = vld [vmem:[%s535 + $0x300] sm:$0xff]
    %v633 = vld [vmem:[%s535 + $0x308] sm:$0xff]
    %v634 = vld [vmem:[%s535 + $0x310] sm:$0xff]
    %v635 = vld [vmem:[%s535 + $0x318] sm:$0xff]
    %v636 = vld [vmem:[%s535 + $0x320] sm:$0xff]
    %v637 = vld [vmem:[%s535 + $0x328] sm:$0xff]
    %v638 = vld [vmem:[%s535 + $0x330] sm:$0xff]
    %v639 = vld [vmem:[%s535 + $0x338] sm:$0xff]
    %v640 = vld [vmem:[%s535 + $0x340] sm:$0xff]
    %v641 = vld [vmem:[%s535 + $0x348] sm:$0xff]
    %v642 = vld [vmem:[%s535 + $0x350] sm:$0xff]
    %v643 = vld [vmem:[%s535 + $0x358] sm:$0xff]
    %v644 = vld [vmem:[%s535 + $0x360] sm:$0xff]
    %v645 = vld [vmem:[%s535 + $0x368] sm:$0xff]
    %v646 = vld [vmem:[%s535 + $0x370] sm:$0xff]
    %v647 = vld [vmem:[%s535 + $0x378] sm:$0xff]
    %v648 = vld [vmem:[%s535 + $0x380] sm:$0xff]
    %v649 = vld [vmem:[%s535 + $0x388] sm:$0xff]
    %v650 = vld [vmem:[%s535 + $0x390] sm:$0xff]
    %v651 = vld [vmem:[%s535 + $0x398] sm:$0xff]
    %v652 = vld [vmem:[%s535 + $0x3a0] sm:$0xff]
    %v653 = vld [vmem:[%s535 + $0x3a8] sm:$0xff]
    %v654 = vld [vmem:[%s535 + $0x3b0] sm:$0xff]
    %v655 = vld [vmem:[%s535 + $0x3b8] sm:$0xff]
    %v656 = vld [vmem:[%s535 + $0x3c0] sm:$0xff]
    %v657 = vld [vmem:[%s535 + $0x3c8] sm:$0xff]
    %v658 = vld [vmem:[%s535 + $0x3d0] sm:$0xff]
    %v659 = vld [vmem:[%s535 + $0x3d8] sm:$0xff]
    %v660 = vld [vmem:[%s535 + $0x3e0] sm:$0xff]
    %v661 = vld [vmem:[%s535 + $0x3e8] sm:$0xff]
    %v662 = vld [vmem:[%s535 + $0x3f0] sm:$0xff]
    %v663 = vld [vmem:[%s535 + $0x3f8] sm:$0xff]
    %664 = vxpose.xlu0.b32.start [1/16] %v536, 128
    %665 = vxpose.xlu0.b32.cont [2/16] %v537, 128
    %666 = vxpose.xlu0.b32.cont [3/16] %v538, 128
    %667 = vxpose.xlu0.b32.cont [4/16] %v539, 128
    %668 = vxpose.xlu0.b32.cont [5/16] %v540, 128
    %669 = vxpose.xlu0.b32.cont [6/16] %v541, 128
    %670 = vxpose.xlu0.b32.cont [7/16] %v542, 128
    %671 = vxpose.xlu0.b32.cont [8/16] %v543, 128
    %672 = vxpose.xlu0.b32.cont [9/16] %v544, 128
    %673 = vxpose.xlu0.b32.cont [10/16] %v545, 128
    %674 = vxpose.xlu0.b32.cont [11/16] %v546, 128
    %675 = vxpose.xlu0.b32.cont [12/16] %v547, 128
    %676 = vxpose.xlu0.b32.cont [13/16] %v548, 128
    %677 = vxpose.xlu0.b32.cont [14/16] %v549, 128
    %678 = vxpose.xlu0.b32.cont [15/16] %v550, 128
    %679 = vxpose.xlu0.b32.end [16/16] %v551, 128
    %v680 = vpop.trf.xlu0
    %v681 = vpop.trf.xlu0
    %v682 = vpop.trf.xlu0
    %v683 = vpop.trf.xlu0
    %v684 = vpop.trf.xlu0
    %v685 = vpop.trf.xlu0
    %v686 = vpop.trf.xlu0
    %v687 = vpop.trf.xlu0
    %v688 = vpop.trf.xlu0
    %v689 = vpop.trf.xlu0
    %v690 = vpop.trf.xlu0
    %v691 = vpop.trf.xlu0
    %v692 = vpop.trf.xlu0
    %v693 = vpop.trf.xlu0
    %v694 = vpop.trf.xlu0
    %v695 = vpop.trf.xlu0
    %696 = vxpose.xlu0.b32.start [1/16] %v552, 128
    %697 = vxpose.xlu0.b32.cont [2/16] %v553, 128
    %698 = vxpose.xlu0.b32.cont [3/16] %v554, 128
    %699 = vxpose.xlu0.b32.cont [4/16] %v555, 128
    %700 = vxpose.xlu0.b32.cont [5/16] %v556, 128
    %701 = vxpose.xlu0.b32.cont [6/16] %v557, 128
    %702 = vxpose.xlu0.b32.cont [7/16] %v558, 128
    %703 = vxpose.xlu0.b32.cont [8/16] %v559, 128
    %704 = vxpose.xlu0.b32.cont [9/16] %v560, 128
    %705 = vxpose.xlu0.b32.cont [10/16] %v561, 128
    %706 = vxpose.xlu0.b32.cont [11/16] %v562, 128
    %707 = vxpose.xlu0.b32.cont [12/16] %v563, 128
    %708 = vxpose.xlu0.b32.cont [13/16] %v564, 128
    %709 = vxpose.xlu0.b32.cont [14/16] %v565, 128
    %710 = vxpose.xlu0.b32.cont [15/16] %v566, 128
    %711 = vxpose.xlu0.b32.end [16/16] %v567, 128
    %v712 = vpop.trf.xlu0
    %v713 = vpop.trf.xlu0
    %v714 = vpop.trf.xlu0
    %v715 = vpop.trf.xlu0
    %v716 = vpop.trf.xlu0
    %v717 = vpop.trf.xlu0
    %v718 = vpop.trf.xlu0
    %v719 = vpop.trf.xlu0
    %v720 = vpop.trf.xlu0
    %v721 = vpop.trf.xlu0
    %v722 = vpop.trf.xlu0
    %v723 = vpop.trf.xlu0
    %v724 = vpop.trf.xlu0
    %v725 = vpop.trf.xlu0
    %v726 = vpop.trf.xlu0
    %v727 = vpop.trf.xlu0
    %728 = vxpose.xlu0.b32.start [1/16] %v568, 128
    %729 = vxpose.xlu0.b32.cont [2/16] %v569, 128
    %730 = vxpose.xlu0.b32.cont [3/16] %v570, 128
    %731 = vxpose.xlu0.b32.cont [4/16] %v571, 128
    %732 = vxpose.xlu0.b32.cont [5/16] %v572, 128
    %733 = vxpose.xlu0.b32.cont [6/16] %v573, 128
    %734 = vxpose.xlu0.b32.cont [7/16] %v574, 128
    %735 = vxpose.xlu0.b32.cont [8/16] %v575, 128
    %736 = vxpose.xlu0.b32.cont [9/16] %v576, 128
    %737 = vxpose.xlu0.b32.cont [10/16] %v577, 128
    %738 = vxpose.xlu0.b32.cont [11/16] %v578, 128
    %739 = vxpose.xlu0.b32.cont [12/16] %v579, 128
    %740 = vxpose.xlu0.b32.cont [13/16] %v580, 128
    %741 = vxpose.xlu0.b32.cont [14/16] %v581, 128
    %742 = vxpose.xlu0.b32.cont [15/16] %v582, 128
    %743 = vxpose.xlu0.b32.end [16/16] %v583, 128
    %v744 = vpop.trf.xlu0
    %v745 = vpop.trf.xlu0
    %v746 = vpop.trf.xlu0
    %v747 = vpop.trf.xlu0
    %v748 = vpop.trf.xlu0
    %v749 = vpop.trf.xlu0
    %v750 = vpop.trf.xlu0
    %v751 = vpop.trf.xlu0
    %v752 = vpop.trf.xlu0
    %v753 = vpop.trf.xlu0
    %v754 = vpop.trf.xlu0
    %v755 = vpop.trf.xlu0
    %v756 = vpop.trf.xlu0
    %v757 = vpop.trf.xlu0
    %v758 = vpop.trf.xlu0
    %v759 = vpop.trf.xlu0
    %760 = vxpose.xlu0.b32.start [1/16] %v584, 128
    %761 = vxpose.xlu0.b32.cont [2/16] %v585, 128
    %762 = vxpose.xlu0.b32.cont [3/16] %v586, 128
    %763 = vxpose.xlu0.b32.cont [4/16] %v587, 128
    %764 = vxpose.xlu0.b32.cont [5/16] %v588, 128
    %765 = vxpose.xlu0.b32.cont [6/16] %v589, 128
    %766 = vxpose.xlu0.b32.cont [7/16] %v590, 128
    %767 = vxpose.xlu0.b32.cont [8/16] %v591, 128
    %768 = vxpose.xlu0.b32.cont [9/16] %v592, 128
    %769 = vxpose.xlu0.b32.cont [10/16] %v593, 128
    %770 = vxpose.xlu0.b32.cont [11/16] %v594, 128
    %771 = vxpose.xlu0.b32.cont [12/16] %v595, 128
    %772 = vxpose.xlu0.b32.cont [13/16] %v596, 128
    %773 = vxpose.xlu0.b32.cont [14/16] %v597, 128
    %774 = vxpose.xlu0.b32.cont [15/16] %v598, 128
    %775 = vxpose.xlu0.b32.end [16/16] %v599, 128
    %v776 = vpop.trf.xlu0
    %v777 = vpop.trf.xlu0
    %v778 = vpop.trf.xlu0
    %v779 = vpop.trf.xlu0
    %v780 = vpop.trf.xlu0
    %v781 = vpop.trf.xlu0
    %v782 = vpop.trf.xlu0
    %v783 = vpop.trf.xlu0
    %v784 = vpop.trf.xlu0
    %v785 = vpop.trf.xlu0
    %v786 = vpop.trf.xlu0
    %v787 = vpop.trf.xlu0
    %v788 = vpop.trf.xlu0
    %v789 = vpop.trf.xlu0
    %v790 = vpop.trf.xlu0
    %v791 = vpop.trf.xlu0
    %792 = vxpose.xlu0.b32.start [1/16] %v600, 128
    %793 = vxpose.xlu0.b32.cont [2/16] %v601, 128
    %794 = vxpose.xlu0.b32.cont [3/16] %v602, 128
    %795 = vxpose.xlu0.b32.cont [4/16] %v603, 128
    %796 = vxpose.xlu0.b32.cont [5/16] %v604, 128
    %797 = vxpose.xlu0.b32.cont [6/16] %v605, 128
    %798 = vxpose.xlu0.b32.cont [7/16] %v606, 128
    %799 = vxpose.xlu0.b32.cont [8/16] %v607, 128
    %800 = vxpose.xlu0.b32.cont [9/16] %v608, 128
    %801 = vxpose.xlu0.b32.cont [10/16] %v609, 128
    %802 = vxpose.xlu0.b32.cont [11/16] %v610, 128
    %803 = vxpose.xlu0.b32.cont [12/16] %v611, 128
    %804 = vxpose.xlu0.b32.cont [13/16] %v612, 128
    %805 = vxpose.xlu0.b32.cont [14/16] %v613, 128
    %806 = vxpose.xlu0.b32.cont [15/16] %v614, 128
    %807 = vxpose.xlu0.b32.end [16/16] %v615, 128
    %v808 = vpop.trf.xlu0
    %v809 = vpop.trf.xlu0
    %v810 = vpop.trf.xlu0
    %v811 = vpop.trf.xlu0
    %v812 = vpop.trf.xlu0
    %v813 = vpop.trf.xlu0
    %v814 = vpop.trf.xlu0
    %v815 = vpop.trf.xlu0
    %v816 = vpop.trf.xlu0
    %v817 = vpop.trf.xlu0
    %v818 = vpop.trf.xlu0
    %v819 = vpop.trf.xlu0
    %v820 = vpop.trf.xlu0
    %v821 = vpop.trf.xlu0
    %v822 = vpop.trf.xlu0
    %v823 = vpop.trf.xlu0
    %824 = vxpose.xlu0.b32.start [1/16] %v616, 128
    %825 = vxpose.xlu0.b32.cont [2/16] %v617, 128
    %826 = vxpose.xlu0.b32.cont [3/16] %v618, 128
    %827 = vxpose.xlu0.b32.cont [4/16] %v619, 128
    %828 = vxpose.xlu0.b32.cont [5/16] %v620, 128
    %829 = vxpose.xlu0.b32.cont [6/16] %v621, 128
    %830 = vxpose.xlu0.b32.cont [7/16] %v622, 128
    %831 = vxpose.xlu0.b32.cont [8/16] %v623, 128
    %832 = vxpose.xlu0.b32.cont [9/16] %v624, 128
    %833 = vxpose.xlu0.b32.cont [10/16] %v625, 128
    %834 = vxpose.xlu0.b32.cont [11/16] %v626, 128
    %835 = vxpose.xlu0.b32.cont [12/16] %v627, 128
    %836 = vxpose.xlu0.b32.cont [13/16] %v628, 128
    %837 = vxpose.xlu0.b32.cont [14/16] %v629, 128
    %838 = vxpose.xlu0.b32.cont [15/16] %v630, 128
    %839 = vxpose.xlu0.b32.end [16/16] %v631, 128
    %v840 = vpop.trf.xlu0
    %v841 = vpop.trf.xlu0
    %v842 = vpop.trf.xlu0
    %v843 = vpop.trf.xlu0
    %v844 = vpop.trf.xlu0
    %v845 = vpop.trf.xlu0
    %v846 = vpop.trf.xlu0
    %v847 = vpop.trf.xlu0
    %v848 = vpop.trf.xlu0
    %v849 = vpop.trf.xlu0
    %v850 = vpop.trf.xlu0
    %v851 = vpop.trf.xlu0
    %v852 = vpop.trf.xlu0
    %v853 = vpop.trf.xlu0
    %v854 = vpop.trf.xlu0
    %v855 = vpop.trf.xlu0
    %856 = vxpose.xlu0.b32.start [1/16] %v632, 128
    %857 = vxpose.xlu0.b32.cont [2/16] %v633, 128
    %858 = vxpose.xlu0.b32.cont [3/16] %v634, 128
    %859 = vxpose.xlu0.b32.cont [4/16] %v635, 128
    %860 = vxpose.xlu0.b32.cont [5/16] %v636, 128
    %861 = vxpose.xlu0.b32.cont [6/16] %v637, 128
    %862 = vxpose.xlu0.b32.cont [7/16] %v638, 128
    %863 = vxpose.xlu0.b32.cont [8/16] %v639, 128
    %864 = vxpose.xlu0.b32.cont [9/16] %v640, 128
    %865 = vxpose.xlu0.b32.cont [10/16] %v641, 128
    %866 = vxpose.xlu0.b32.cont [11/16] %v642, 128
    %867 = vxpose.xlu0.b32.cont [12/16] %v643, 128
    %868 = vxpose.xlu0.b32.cont [13/16] %v644, 128
    %869 = vxpose.xlu0.b32.cont [14/16] %v645, 128
    %870 = vxpose.xlu0.b32.cont [15/16] %v646, 128
    %871 = vxpose.xlu0.b32.end [16/16] %v647, 128
    %v872 = vpop.trf.xlu0
    %v873 = vpop.trf.xlu0
    %v874 = vpop.trf.xlu0
    %v875 = vpop.trf.xlu0
    %v876 = vpop.trf.xlu0
    %v877 = vpop.trf.xlu0
    %v878 = vpop.trf.xlu0
    %v879 = vpop.trf.xlu0
    %v880 = vpop.trf.xlu0
    %v881 = vpop.trf.xlu0
    %v882 = vpop.trf.xlu0
    %v883 = vpop.trf.xlu0
    %v884 = vpop.trf.xlu0
    %v885 = vpop.trf.xlu0
    %v886 = vpop.trf.xlu0
    %v887 = vpop.trf.xlu0
    %888 = vxpose.xlu0.b32.start [1/16] %v648, 128
    %889 = vxpose.xlu0.b32.cont [2/16] %v649, 128
    %890 = vxpose.xlu0.b32.cont [3/16] %v650, 128
    %891 = vxpose.xlu0.b32.cont [4/16] %v651, 128
    %892 = vxpose.xlu0.b32.cont [5/16] %v652, 128
    %893 = vxpose.xlu0.b32.cont [6/16] %v653, 128
    %894 = vxpose.xlu0.b32.cont [7/16] %v654, 128
    %895 = vxpose.xlu0.b32.cont [8/16] %v655, 128
    %896 = vxpose.xlu0.b32.cont [9/16] %v656, 128
    %897 = vxpose.xlu0.b32.cont [10/16] %v657, 128
    %898 = vxpose.xlu0.b32.cont [11/16] %v658, 128
    %899 = vxpose.xlu0.b32.cont [12/16] %v659, 128
    %900 = vxpose.xlu0.b32.cont [13/16] %v660, 128
    %901 = vxpose.xlu0.b32.cont [14/16] %v661, 128
    %902 = vxpose.xlu0.b32.cont [15/16] %v662, 128
    %903 = vxpose.xlu0.b32.end [16/16] %v663, 128
    %v904 = vpop.trf.xlu0
    %v905 = vpop.trf.xlu0
    %v906 = vpop.trf.xlu0
    %v907 = vpop.trf.xlu0
    %v908 = vpop.trf.xlu0
    %v909 = vpop.trf.xlu0
    %v910 = vpop.trf.xlu0
    %v911 = vpop.trf.xlu0
    %v912 = vpop.trf.xlu0
    %v913 = vpop.trf.xlu0
    %v914 = vpop.trf.xlu0
    %v915 = vpop.trf.xlu0
    %v916 = vpop.trf.xlu0
    %v917 = vpop.trf.xlu0
    %v918 = vpop.trf.xlu0
    %v919 = vpop.trf.xlu0
    %s920 = scalar_lea.vmem [#allocation5], 1024
    %921 = vst [vmem:[%s920] sm:$0xff] %v680
    %922 = vst [vmem:[%s920 + $0x8] sm:$0xff] %v712
    %923 = vst [vmem:[%s920 + $0x10] sm:$0xff] %v744
    %924 = vst [vmem:[%s920 + $0x18] sm:$0xff] %v776
    %925 = vst [vmem:[%s920 + $0x20] sm:$0xff] %v808
    %926 = vst [vmem:[%s920 + $0x28] sm:$0xff] %v840
    %927 = vst [vmem:[%s920 + $0x30] sm:$0xff] %v872
    %928 = vst [vmem:[%s920 + $0x38] sm:$0xff] %v904
    %929 = vst [vmem:[%s920 + $0x40] sm:$0xff] %v681
    %930 = vst [vmem:[%s920 + $0x48] sm:$0xff] %v713
    %931 = vst [vmem:[%s920 + $0x50] sm:$0xff] %v745
    %932 = vst [vmem:[%s920 + $0x58] sm:$0xff] %v777
    %933 = vst [vmem:[%s920 + $0x60] sm:$0xff] %v809
    %934 = vst [vmem:[%s920 + $0x68] sm:$0xff] %v841
    %935 = vst [vmem:[%s920 + $0x70] sm:$0xff] %v873
    %936 = vst [vmem:[%s920 + $0x78] sm:$0xff] %v905
    %937 = vst [vmem:[%s920 + $0x80] sm:$0xff] %v682
    %938 = vst [vmem:[%s920 + $0x88] sm:$0xff] %v714
    %939 = vst [vmem:[%s920 + $0x90] sm:$0xff] %v746
    %940 = vst [vmem:[%s920 + $0x98] sm:$0xff] %v778
    %941 = vst [vmem:[%s920 + $0xa0] sm:$0xff] %v810
    %942 = vst [vmem:[%s920 + $0xa8] sm:$0xff] %v842
    %943 = vst [vmem:[%s920 + $0xb0] sm:$0xff] %v874
    %944 = vst [vmem:[%s920 + $0xb8] sm:$0xff] %v906
    %945 = vst [vmem:[%s920 + $0xc0] sm:$0xff] %v683
    %946 = vst [vmem:[%s920 + $0xc8] sm:$0xff] %v715
    %947 = vst [vmem:[%s920 + $0xd0] sm:$0xff] %v747
    %948 = vst [vmem:[%s920 + $0xd8] sm:$0xff] %v779
    %949 = vst [vmem:[%s920 + $0xe0] sm:$0xff] %v811
    %950 = vst [vmem:[%s920 + $0xe8] sm:$0xff] %v843
    %951 = vst [vmem:[%s920 + $0xf0] sm:$0xff] %v875
    %952 = vst [vmem:[%s920 + $0xf8] sm:$0xff] %v907
    %953 = vst [vmem:[%s920 + $0x100] sm:$0xff] %v684
    %954 = vst [vmem:[%s920 + $0x108] sm:$0xff] %v716
    %955 = vst [vmem:[%s920 + $0x110] sm:$0xff] %v748
    %956 = vst [vmem:[%s920 + $0x118] sm:$0xff] %v780
    %957 = vst [vmem:[%s920 + $0x120] sm:$0xff] %v812
    %958 = vst [vmem:[%s920 + $0x128] sm:$0xff] %v844
    %959 = vst [vmem:[%s920 + $0x130] sm:$0xff] %v876
    %960 = vst [vmem:[%s920 + $0x138] sm:$0xff] %v908
    %961 = vst [vmem:[%s920 + $0x140] sm:$0xff] %v685
    %962 = vst [vmem:[%s920 + $0x148] sm:$0xff] %v717
    %963 = vst [vmem:[%s920 + $0x150] sm:$0xff] %v749
    %964 = vst [vmem:[%s920 + $0x158] sm:$0xff] %v781
    %965 = vst [vmem:[%s920 + $0x160] sm:$0xff] %v813
    %966 = vst [vmem:[%s920 + $0x168] sm:$0xff] %v845
    %967 = vst [vmem:[%s920 + $0x170] sm:$0xff] %v877
    %968 = vst [vmem:[%s920 + $0x178] sm:$0xff] %v909
    %969 = vst [vmem:[%s920 + $0x180] sm:$0xff] %v686
    %970 = vst [vmem:[%s920 + $0x188] sm:$0xff] %v718
    %971 = vst [vmem:[%s920 + $0x190] sm:$0xff] %v750
    %972 = vst [vmem:[%s920 + $0x198] sm:$0xff] %v782
    %973 = vst [vmem:[%s920 + $0x1a0] sm:$0xff] %v814
    %974 = vst [vmem:[%s920 + $0x1a8] sm:$0xff] %v846
    %975 = vst [vmem:[%s920 + $0x1b0] sm:$0xff] %v878
    %976 = vst [vmem:[%s920 + $0x1b8] sm:$0xff] %v910
    %977 = vst [vmem:[%s920 + $0x1c0] sm:$0xff] %v687
    %978 = vst [vmem:[%s920 + $0x1c8] sm:$0xff] %v719
    %979 = vst [vmem:[%s920 + $0x1d0] sm:$0xff] %v751
    %980 = vst [vmem:[%s920 + $0x1d8] sm:$0xff] %v783
    %981 = vst [vmem:[%s920 + $0x1e0] sm:$0xff] %v815
    %982 = vst [vmem:[%s920 + $0x1e8] sm:$0xff] %v847
    %983 = vst [vmem:[%s920 + $0x1f0] sm:$0xff] %v879
    %984 = vst [vmem:[%s920 + $0x1f8] sm:$0xff] %v911
    %985 = vst [vmem:[%s920 + $0x200] sm:$0xff] %v688
    %986 = vst [vmem:[%s920 + $0x208] sm:$0xff] %v720
    %987 = vst [vmem:[%s920 + $0x210] sm:$0xff] %v752
    %988 = vst [vmem:[%s920 + $0x218] sm:$0xff] %v784
    %989 = vst [vmem:[%s920 + $0x220] sm:$0xff] %v816
    %990 = vst [vmem:[%s920 + $0x228] sm:$0xff] %v848
    %991 = vst [vmem:[%s920 + $0x230] sm:$0xff] %v880
    %992 = vst [vmem:[%s920 + $0x238] sm:$0xff] %v912
    %993 = vst [vmem:[%s920 + $0x240] sm:$0xff] %v689
    %994 = vst [vmem:[%s920 + $0x248] sm:$0xff] %v721
    %995 = vst [vmem:[%s920 + $0x250] sm:$0xff] %v753
    %996 = vst [vmem:[%s920 + $0x258] sm:$0xff] %v785
    %997 = vst [vmem:[%s920 + $0x260] sm:$0xff] %v817
    %998 = vst [vmem:[%s920 + $0x268] sm:$0xff] %v849
    %999 = vst [vmem:[%s920 + $0x270] sm:$0xff] %v881
    %1000 = vst [vmem:[%s920 + $0x278] sm:$0xff] %v913
    %1001 = vst [vmem:[%s920 + $0x280] sm:$0xff] %v690
    %1002 = vst [vmem:[%s920 + $0x288] sm:$0xff] %v722
    %1003 = vst [vmem:[%s920 + $0x290] sm:$0xff] %v754
    %1004 = vst [vmem:[%s920 + $0x298] sm:$0xff] %v786
    %1005 = vst [vmem:[%s920 + $0x2a0] sm:$0xff] %v818
    %1006 = vst [vmem:[%s920 + $0x2a8] sm:$0xff] %v850
    %1007 = vst [vmem:[%s920 + $0x2b0] sm:$0xff] %v882
    %1008 = vst [vmem:[%s920 + $0x2b8] sm:$0xff] %v914
    %1009 = vst [vmem:[%s920 + $0x2c0] sm:$0xff] %v691
    %1010 = vst [vmem:[%s920 + $0x2c8] sm:$0xff] %v723
    %1011 = vst [vmem:[%s920 + $0x2d0] sm:$0xff] %v755
    %1012 = vst [vmem:[%s920 + $0x2d8] sm:$0xff] %v787
    %1013 = vst [vmem:[%s920 + $0x2e0] sm:$0xff] %v819
    %1014 = vst [vmem:[%s920 + $0x2e8] sm:$0xff] %v851
    %1015 = vst [vmem:[%s920 + $0x2f0] sm:$0xff] %v883
    %1016 = vst [vmem:[%s920 + $0x2f8] sm:$0xff] %v915
    %1017 = vst [vmem:[%s920 + $0x300] sm:$0xff] %v692
    %1018 = vst [vmem:[%s920 + $0x308] sm:$0xff] %v724
    %1019 = vst [vmem:[%s920 + $0x310] sm:$0xff] %v756
    %1020 = vst [vmem:[%s920 + $0x318] sm:$0xff] %v788
    %1021 = vst [vmem:[%s920 + $0x320] sm:$0xff] %v820
    %1022 = vst [vmem:[%s920 + $0x328] sm:$0xff] %v852
    %1023 = vst [vmem:[%s920 + $0x330] sm:$0xff] %v884
    %1024 = vst [vmem:[%s920 + $0x338] sm:$0xff] %v916
    %1025 = vst [vmem:[%s920 + $0x340] sm:$0xff] %v693
    %1026 = vst [vmem:[%s920 + $0x348] sm:$0xff] %v725
    %1027 = vst [vmem:[%s920 + $0x350] sm:$0xff] %v757
    %1028 = vst [vmem:[%s920 + $0x358] sm:$0xff] %v789
    %1029 = vst [vmem:[%s920 + $0x360] sm:$0xff] %v821
    %1030 = vst [vmem:[%s920 + $0x368] sm:$0xff] %v853
    %1031 = vst [vmem:[%s920 + $0x370] sm:$0xff] %v885
    %1032 = vst [vmem:[%s920 + $0x378] sm:$0xff] %v917
    %1033 = vst [vmem:[%s920 + $0x380] sm:$0xff] %v694
    %1034 = vst [vmem:[%s920 + $0x388] sm:$0xff] %v726
    %1035 = vst [vmem:[%s920 + $0x390] sm:$0xff] %v758
    %1036 = vst [vmem:[%s920 + $0x398] sm:$0xff] %v790
    %1037 = vst [vmem:[%s920 + $0x3a0] sm:$0xff] %v822
    %1038 = vst [vmem:[%s920 + $0x3a8] sm:$0xff] %v854
    %1039 = vst [vmem:[%s920 + $0x3b0] sm:$0xff] %v886
    %1040 = vst [vmem:[%s920 + $0x3b8] sm:$0xff] %v918
    %1041 = vst [vmem:[%s920 + $0x3c0] sm:$0xff] %v695
    %1042 = vst [vmem:[%s920 + $0x3c8] sm:$0xff] %v727
    %1043 = vst [vmem:[%s920 + $0x3d0] sm:$0xff] %v759
    %1044 = vst [vmem:[%s920 + $0x3d8] sm:$0xff] %v791
    %1045 = vst [vmem:[%s920 + $0x3e0] sm:$0xff] %v823
    %1046 = vst [vmem:[%s920 + $0x3e8] sm:$0xff] %v855
    %1047 = vst [vmem:[%s920 + $0x3f0] sm:$0xff] %v887
    %1048 = vst [vmem:[%s920 + $0x3f8] sm:$0xff] %v919
    %s1049 = scalar_lea.vmem [#allocation2], 2048
    %v1050 = vld [vmem:[%s1049] sm:$0xff]
    %v1051 = vld [vmem:[%s1049 + $0x8] sm:$0xff]
    %v1052 = vld [vmem:[%s1049 + $0x10] sm:$0xff]
    %v1053 = vld [vmem:[%s1049 + $0x18] sm:$0xff]
    %v1054 = vld [vmem:[%s1049 + $0x20] sm:$0xff]
    %v1055 = vld [vmem:[%s1049 + $0x28] sm:$0xff]
    %v1056 = vld [vmem:[%s1049 + $0x30] sm:$0xff]
    %v1057 = vld [vmem:[%s1049 + $0x38] sm:$0xff]
    %v1058 = vld [vmem:[%s1049 + $0x40] sm:$0xff]
    %v1059 = vld [vmem:[%s1049 + $0x48] sm:$0xff]
    %v1060 = vld [vmem:[%s1049 + $0x50] sm:$0xff]
    %v1061 = vld [vmem:[%s1049 + $0x58] sm:$0xff]
    %v1062 = vld [vmem:[%s1049 + $0x60] sm:$0xff]
    %v1063 = vld [vmem:[%s1049 + $0x68] sm:$0xff]
    %v1064 = vld [vmem:[%s1049 + $0x70] sm:$0xff]
    %v1065 = vld [vmem:[%s1049 + $0x78] sm:$0xff]
    %v1066 = vld [vmem:[%s1049 + $0x80] sm:$0xff]
    %v1067 = vld [vmem:[%s1049 + $0x88] sm:$0xff]
    %v1068 = vld [vmem:[%s1049 + $0x90] sm:$0xff]
    %v1069 = vld [vmem:[%s1049 + $0x98] sm:$0xff]
    %v1070 = vld [vmem:[%s1049 + $0xa0] sm:$0xff]
    %v1071 = vld [vmem:[%s1049 + $0xa8] sm:$0xff]
    %v1072 = vld [vmem:[%s1049 + $0xb0] sm:$0xff]
    %v1073 = vld [vmem:[%s1049 + $0xb8] sm:$0xff]
    %v1074 = vld [vmem:[%s1049 + $0xc0] sm:$0xff]
    %v1075 = vld [vmem:[%s1049 + $0xc8] sm:$0xff]
    %v1076 = vld [vmem:[%s1049 + $0xd0] sm:$0xff]
    %v1077 = vld [vmem:[%s1049 + $0xd8] sm:$0xff]
    %v1078 = vld [vmem:[%s1049 + $0xe0] sm:$0xff]
    %v1079 = vld [vmem:[%s1049 + $0xe8] sm:$0xff]
    %v1080 = vld [vmem:[%s1049 + $0xf0] sm:$0xff]
    %v1081 = vld [vmem:[%s1049 + $0xf8] sm:$0xff]
    %v1082 = vld [vmem:[%s1049 + $0x100] sm:$0xff]
    %v1083 = vld [vmem:[%s1049 + $0x108] sm:$0xff]
    %v1084 = vld [vmem:[%s1049 + $0x110] sm:$0xff]
    %v1085 = vld [vmem:[%s1049 + $0x118] sm:$0xff]
    %v1086 = vld [vmem:[%s1049 + $0x120] sm:$0xff]
    %v1087 = vld [vmem:[%s1049 + $0x128] sm:$0xff]
    %v1088 = vld [vmem:[%s1049 + $0x130] sm:$0xff]
    %v1089 = vld [vmem:[%s1049 + $0x138] sm:$0xff]
    %v1090 = vld [vmem:[%s1049 + $0x140] sm:$0xff]
    %v1091 = vld [vmem:[%s1049 + $0x148] sm:$0xff]
    %v1092 = vld [vmem:[%s1049 + $0x150] sm:$0xff]
    %v1093 = vld [vmem:[%s1049 + $0x158] sm:$0xff]
    %v1094 = vld [vmem:[%s1049 + $0x160] sm:$0xff]
    %v1095 = vld [vmem:[%s1049 + $0x168] sm:$0xff]
    %v1096 = vld [vmem:[%s1049 + $0x170] sm:$0xff]
    %v1097 = vld [vmem:[%s1049 + $0x178] sm:$0xff]
    %v1098 = vld [vmem:[%s1049 + $0x180] sm:$0xff]
    %v1099 = vld [vmem:[%s1049 + $0x188] sm:$0xff]
    %v1100 = vld [vmem:[%s1049 + $0x190] sm:$0xff]
    %v1101 = vld [vmem:[%s1049 + $0x198] sm:$0xff]
    %v1102 = vld [vmem:[%s1049 + $0x1a0] sm:$0xff]
    %v1103 = vld [vmem:[%s1049 + $0x1a8] sm:$0xff]
    %v1104 = vld [vmem:[%s1049 + $0x1b0] sm:$0xff]
    %v1105 = vld [vmem:[%s1049 + $0x1b8] sm:$0xff]
    %v1106 = vld [vmem:[%s1049 + $0x1c0] sm:$0xff]
    %v1107 = vld [vmem:[%s1049 + $0x1c8] sm:$0xff]
    %v1108 = vld [vmem:[%s1049 + $0x1d0] sm:$0xff]
    %v1109 = vld [vmem:[%s1049 + $0x1d8] sm:$0xff]
    %v1110 = vld [vmem:[%s1049 + $0x1e0] sm:$0xff]
    %v1111 = vld [vmem:[%s1049 + $0x1e8] sm:$0xff]
    %v1112 = vld [vmem:[%s1049 + $0x1f0] sm:$0xff]
    %v1113 = vld [vmem:[%s1049 + $0x1f8] sm:$0xff]
    %v1114 = vld [vmem:[%s1049 + $0x200] sm:$0xff]
    %v1115 = vld [vmem:[%s1049 + $0x208] sm:$0xff]
    %v1116 = vld [vmem:[%s1049 + $0x210] sm:$0xff]
    %v1117 = vld [vmem:[%s1049 + $0x218] sm:$0xff]
    %v1118 = vld [vmem:[%s1049 + $0x220] sm:$0xff]
    %v1119 = vld [vmem:[%s1049 + $0x228] sm:$0xff]
    %v1120 = vld [vmem:[%s1049 + $0x230] sm:$0xff]
    %v1121 = vld [vmem:[%s1049 + $0x238] sm:$0xff]
    %v1122 = vld [vmem:[%s1049 + $0x240] sm:$0xff]
    %v1123 = vld [vmem:[%s1049 + $0x248] sm:$0xff]
    %v1124 = vld [vmem:[%s1049 + $0x250] sm:$0xff]
    %v1125 = vld [vmem:[%s1049 + $0x258] sm:$0xff]
    %v1126 = vld [vmem:[%s1049 + $0x260] sm:$0xff]
    %v1127 = vld [vmem:[%s1049 + $0x268] sm:$0xff]
    %v1128 = vld [vmem:[%s1049 + $0x270] sm:$0xff]
    %v1129 = vld [vmem:[%s1049 + $0x278] sm:$0xff]
    %v1130 = vld [vmem:[%s1049 + $0x280] sm:$0xff]
    %v1131 = vld [vmem:[%s1049 + $0x288] sm:$0xff]
    %v1132 = vld [vmem:[%s1049 + $0x290] sm:$0xff]
    %v1133 = vld [vmem:[%s1049 + $0x298] sm:$0xff]
    %v1134 = vld [vmem:[%s1049 + $0x2a0] sm:$0xff]
    %v1135 = vld [vmem:[%s1049 + $0x2a8] sm:$0xff]
    %v1136 = vld [vmem:[%s1049 + $0x2b0] sm:$0xff]
    %v1137 = vld [vmem:[%s1049 + $0x2b8] sm:$0xff]
    %v1138 = vld [vmem:[%s1049 + $0x2c0] sm:$0xff]
    %v1139 = vld [vmem:[%s1049 + $0x2c8] sm:$0xff]
    %v1140 = vld [vmem:[%s1049 + $0x2d0] sm:$0xff]
    %v1141 = vld [vmem:[%s1049 + $0x2d8] sm:$0xff]
    %v1142 = vld [vmem:[%s1049 + $0x2e0] sm:$0xff]
    %v1143 = vld [vmem:[%s1049 + $0x2e8] sm:$0xff]
    %v1144 = vld [vmem:[%s1049 + $0x2f0] sm:$0xff]
    %v1145 = vld [vmem:[%s1049 + $0x2f8] sm:$0xff]
    %v1146 = vld [vmem:[%s1049 + $0x300] sm:$0xff]
    %v1147 = vld [vmem:[%s1049 + $0x308] sm:$0xff]
    %v1148 = vld [vmem:[%s1049 + $0x310] sm:$0xff]
    %v1149 = vld [vmem:[%s1049 + $0x318] sm:$0xff]
    %v1150 = vld [vmem:[%s1049 + $0x320] sm:$0xff]
    %v1151 = vld [vmem:[%s1049 + $0x328] sm:$0xff]
    %v1152 = vld [vmem:[%s1049 + $0x330] sm:$0xff]
    %v1153 = vld [vmem:[%s1049 + $0x338] sm:$0xff]
    %v1154 = vld [vmem:[%s1049 + $0x340] sm:$0xff]
    %v1155 = vld [vmem:[%s1049 + $0x348] sm:$0xff]
    %v1156 = vld [vmem:[%s1049 + $0x350] sm:$0xff]
    %v1157 = vld [vmem:[%s1049 + $0x358] sm:$0xff]
    %v1158 = vld [vmem:[%s1049 + $0x360] sm:$0xff]
    %v1159 = vld [vmem:[%s1049 + $0x368] sm:$0xff]
    %v1160 = vld [vmem:[%s1049 + $0x370] sm:$0xff]
    %v1161 = vld [vmem:[%s1049 + $0x378] sm:$0xff]
    %v1162 = vld [vmem:[%s1049 + $0x380] sm:$0xff]
    %v1163 = vld [vmem:[%s1049 + $0x388] sm:$0xff]
    %v1164 = vld [vmem:[%s1049 + $0x390] sm:$0xff]
    %v1165 = vld [vmem:[%s1049 + $0x398] sm:$0xff]
    %v1166 = vld [vmem:[%s1049 + $0x3a0] sm:$0xff]
    %v1167 = vld [vmem:[%s1049 + $0x3a8] sm:$0xff]
    %v1168 = vld [vmem:[%s1049 + $0x3b0] sm:$0xff]
    %v1169 = vld [vmem:[%s1049 + $0x3b8] sm:$0xff]
    %v1170 = vld [vmem:[%s1049 + $0x3c0] sm:$0xff]
    %v1171 = vld [vmem:[%s1049 + $0x3c8] sm:$0xff]
    %v1172 = vld [vmem:[%s1049 + $0x3d0] sm:$0xff]
    %v1173 = vld [vmem:[%s1049 + $0x3d8] sm:$0xff]
    %v1174 = vld [vmem:[%s1049 + $0x3e0] sm:$0xff]
    %v1175 = vld [vmem:[%s1049 + $0x3e8] sm:$0xff]
    %v1176 = vld [vmem:[%s1049 + $0x3f0] sm:$0xff]
    %v1177 = vld [vmem:[%s1049 + $0x3f8] sm:$0xff]
    %1178 = vxpose.xlu0.b32.start [1/16] %v1050, 128
    %1179 = vxpose.xlu0.b32.cont [2/16] %v1051, 128
    %1180 = vxpose.xlu0.b32.cont [3/16] %v1052, 128
    %1181 = vxpose.xlu0.b32.cont [4/16] %v1053, 128
    %1182 = vxpose.xlu0.b32.cont [5/16] %v1054, 128
    %1183 = vxpose.xlu0.b32.cont [6/16] %v1055, 128
    %1184 = vxpose.xlu0.b32.cont [7/16] %v1056, 128
    %1185 = vxpose.xlu0.b32.cont [8/16] %v1057, 128
    %1186 = vxpose.xlu0.b32.cont [9/16] %v1058, 128
    %1187 = vxpose.xlu0.b32.cont [10/16] %v1059, 128
    %1188 = vxpose.xlu0.b32.cont [11/16] %v1060, 128
    %1189 = vxpose.xlu0.b32.cont [12/16] %v1061, 128
    %1190 = vxpose.xlu0.b32.cont [13/16] %v1062, 128
    %1191 = vxpose.xlu0.b32.cont [14/16] %v1063, 128
    %1192 = vxpose.xlu0.b32.cont [15/16] %v1064, 128
    %1193 = vxpose.xlu0.b32.end [16/16] %v1065, 128
    %v1194 = vpop.trf.xlu0
    %v1195 = vpop.trf.xlu0
    %v1196 = vpop.trf.xlu0
    %v1197 = vpop.trf.xlu0
    %v1198 = vpop.trf.xlu0
    %v1199 = vpop.trf.xlu0
    %v1200 = vpop.trf.xlu0
    %v1201 = vpop.trf.xlu0
    %v1202 = vpop.trf.xlu0
    %v1203 = vpop.trf.xlu0
    %v1204 = vpop.trf.xlu0
    %v1205 = vpop.trf.xlu0
    %v1206 = vpop.trf.xlu0
    %v1207 = vpop.trf.xlu0
    %v1208 = vpop.trf.xlu0
    %v1209 = vpop.trf.xlu0
    %1210 = vxpose.xlu0.b32.start [1/16] %v1066, 128
    %1211 = vxpose.xlu0.b32.cont [2/16] %v1067, 128
    %1212 = vxpose.xlu0.b32.cont [3/16] %v1068, 128
    %1213 = vxpose.xlu0.b32.cont [4/16] %v1069, 128
    %1214 = vxpose.xlu0.b32.cont [5/16] %v1070, 128
    %1215 = vxpose.xlu0.b32.cont [6/16] %v1071, 128
    %1216 = vxpose.xlu0.b32.cont [7/16] %v1072, 128
    %1217 = vxpose.xlu0.b32.cont [8/16] %v1073, 128
    %1218 = vxpose.xlu0.b32.cont [9/16] %v1074, 128
    %1219 = vxpose.xlu0.b32.cont [10/16] %v1075, 128
    %1220 = vxpose.xlu0.b32.cont [11/16] %v1076, 128
    %1221 = vxpose.xlu0.b32.cont [12/16] %v1077, 128
    %1222 = vxpose.xlu0.b32.cont [13/16] %v1078, 128
    %1223 = vxpose.xlu0.b32.cont [14/16] %v1079, 128
    %1224 = vxpose.xlu0.b32.cont [15/16] %v1080, 128
    %1225 = vxpose.xlu0.b32.end [16/16] %v1081, 128
    %v1226 = vpop.trf.xlu0
    %v1227 = vpop.trf.xlu0
    %v1228 = vpop.trf.xlu0
    %v1229 = vpop.trf.xlu0
    %v1230 = vpop.trf.xlu0
    %v1231 = vpop.trf.xlu0
    %v1232 = vpop.trf.xlu0
    %v1233 = vpop.trf.xlu0
    %v1234 = vpop.trf.xlu0
    %v1235 = vpop.trf.xlu0
    %v1236 = vpop.trf.xlu0
    %v1237 = vpop.trf.xlu0
    %v1238 = vpop.trf.xlu0
    %v1239 = vpop.trf.xlu0
    %v1240 = vpop.trf.xlu0
    %v1241 = vpop.trf.xlu0
    %1242 = vxpose.xlu0.b32.start [1/16] %v1082, 128
    %1243 = vxpose.xlu0.b32.cont [2/16] %v1083, 128
    %1244 = vxpose.xlu0.b32.cont [3/16] %v1084, 128
    %1245 = vxpose.xlu0.b32.cont [4/16] %v1085, 128
    %1246 = vxpose.xlu0.b32.cont [5/16] %v1086, 128
    %1247 = vxpose.xlu0.b32.cont [6/16] %v1087, 128
    %1248 = vxpose.xlu0.b32.cont [7/16] %v1088, 128
    %1249 = vxpose.xlu0.b32.cont [8/16] %v1089, 128
    %1250 = vxpose.xlu0.b32.cont [9/16] %v1090, 128
    %1251 = vxpose.xlu0.b32.cont [10/16] %v1091, 128
    %1252 = vxpose.xlu0.b32.cont [11/16] %v1092, 128
    %1253 = vxpose.xlu0.b32.cont [12/16] %v1093, 128
    %1254 = vxpose.xlu0.b32.cont [13/16] %v1094, 128
    %1255 = vxpose.xlu0.b32.cont [14/16] %v1095, 128
    %1256 = vxpose.xlu0.b32.cont [15/16] %v1096, 128
    %1257 = vxpose.xlu0.b32.end [16/16] %v1097, 128
    %v1258 = vpop.trf.xlu0
    %v1259 = vpop.trf.xlu0
    %v1260 = vpop.trf.xlu0
    %v1261 = vpop.trf.xlu0
    %v1262 = vpop.trf.xlu0
    %v1263 = vpop.trf.xlu0
    %v1264 = vpop.trf.xlu0
    %v1265 = vpop.trf.xlu0
    %v1266 = vpop.trf.xlu0
    %v1267 = vpop.trf.xlu0
    %v1268 = vpop.trf.xlu0
    %v1269 = vpop.trf.xlu0
    %v1270 = vpop.trf.xlu0
    %v1271 = vpop.trf.xlu0
    %v1272 = vpop.trf.xlu0
    %v1273 = vpop.trf.xlu0
    %1274 = vxpose.xlu0.b32.start [1/16] %v1098, 128
    %1275 = vxpose.xlu0.b32.cont [2/16] %v1099, 128
    %1276 = vxpose.xlu0.b32.cont [3/16] %v1100, 128
    %1277 = vxpose.xlu0.b32.cont [4/16] %v1101, 128
    %1278 = vxpose.xlu0.b32.cont [5/16] %v1102, 128
    %1279 = vxpose.xlu0.b32.cont [6/16] %v1103, 128
    %1280 = vxpose.xlu0.b32.cont [7/16] %v1104, 128
    %1281 = vxpose.xlu0.b32.cont [8/16] %v1105, 128
    %1282 = vxpose.xlu0.b32.cont [9/16] %v1106, 128
    %1283 = vxpose.xlu0.b32.cont [10/16] %v1107, 128
    %1284 = vxpose.xlu0.b32.cont [11/16] %v1108, 128
    %1285 = vxpose.xlu0.b32.cont [12/16] %v1109, 128
    %1286 = vxpose.xlu0.b32.cont [13/16] %v1110, 128
    %1287 = vxpose.xlu0.b32.cont [14/16] %v1111, 128
    %1288 = vxpose.xlu0.b32.cont [15/16] %v1112, 128
    %1289 = vxpose.xlu0.b32.end [16/16] %v1113, 128
    %v1290 = vpop.trf.xlu0
    %v1291 = vpop.trf.xlu0
    %v1292 = vpop.trf.xlu0
    %v1293 = vpop.trf.xlu0
    %v1294 = vpop.trf.xlu0
    %v1295 = vpop.trf.xlu0
    %v1296 = vpop.trf.xlu0
    %v1297 = vpop.trf.xlu0
    %v1298 = vpop.trf.xlu0
    %v1299 = vpop.trf.xlu0
    %v1300 = vpop.trf.xlu0
    %v1301 = vpop.trf.xlu0
    %v1302 = vpop.trf.xlu0
    %v1303 = vpop.trf.xlu0
    %v1304 = vpop.trf.xlu0
    %v1305 = vpop.trf.xlu0
    %1306 = vxpose.xlu0.b32.start [1/16] %v1114, 128
    %1307 = vxpose.xlu0.b32.cont [2/16] %v1115, 128
    %1308 = vxpose.xlu0.b32.cont [3/16] %v1116, 128
    %1309 = vxpose.xlu0.b32.cont [4/16] %v1117, 128
    %1310 = vxpose.xlu0.b32.cont [5/16] %v1118, 128
    %1311 = vxpose.xlu0.b32.cont [6/16] %v1119, 128
    %1312 = vxpose.xlu0.b32.cont [7/16] %v1120, 128
    %1313 = vxpose.xlu0.b32.cont [8/16] %v1121, 128
    %1314 = vxpose.xlu0.b32.cont [9/16] %v1122, 128
    %1315 = vxpose.xlu0.b32.cont [10/16] %v1123, 128
    %1316 = vxpose.xlu0.b32.cont [11/16] %v1124, 128
    %1317 = vxpose.xlu0.b32.cont [12/16] %v1125, 128
    %1318 = vxpose.xlu0.b32.cont [13/16] %v1126, 128
    %1319 = vxpose.xlu0.b32.cont [14/16] %v1127, 128
    %1320 = vxpose.xlu0.b32.cont [15/16] %v1128, 128
    %1321 = vxpose.xlu0.b32.end [16/16] %v1129, 128
    %v1322 = vpop.trf.xlu0
    %v1323 = vpop.trf.xlu0
    %v1324 = vpop.trf.xlu0
    %v1325 = vpop.trf.xlu0
    %v1326 = vpop.trf.xlu0
    %v1327 = vpop.trf.xlu0
    %v1328 = vpop.trf.xlu0
    %v1329 = vpop.trf.xlu0
    %v1330 = vpop.trf.xlu0
    %v1331 = vpop.trf.xlu0
    %v1332 = vpop.trf.xlu0
    %v1333 = vpop.trf.xlu0
    %v1334 = vpop.trf.xlu0
    %v1335 = vpop.trf.xlu0
    %v1336 = vpop.trf.xlu0
    %v1337 = vpop.trf.xlu0
    %1338 = vxpose.xlu0.b32.start [1/16] %v1130, 128
    %1339 = vxpose.xlu0.b32.cont [2/16] %v1131, 128
    %1340 = vxpose.xlu0.b32.cont [3/16] %v1132, 128
    %1341 = vxpose.xlu0.b32.cont [4/16] %v1133, 128
    %1342 = vxpose.xlu0.b32.cont [5/16] %v1134, 128
    %1343 = vxpose.xlu0.b32.cont [6/16] %v1135, 128
    %1344 = vxpose.xlu0.b32.cont [7/16] %v1136, 128
    %1345 = vxpose.xlu0.b32.cont [8/16] %v1137, 128
    %1346 = vxpose.xlu0.b32.cont [9/16] %v1138, 128
    %1347 = vxpose.xlu0.b32.cont [10/16] %v1139, 128
    %1348 = vxpose.xlu0.b32.cont [11/16] %v1140, 128
    %1349 = vxpose.xlu0.b32.cont [12/16] %v1141, 128
    %1350 = vxpose.xlu0.b32.cont [13/16] %v1142, 128
    %1351 = vxpose.xlu0.b32.cont [14/16] %v1143, 128
    %1352 = vxpose.xlu0.b32.cont [15/16] %v1144, 128
    %1353 = vxpose.xlu0.b32.end [16/16] %v1145, 128
    %v1354 = vpop.trf.xlu0
    %v1355 = vpop.trf.xlu0
    %v1356 = vpop.trf.xlu0
    %v1357 = vpop.trf.xlu0
    %v1358 = vpop.trf.xlu0
    %v1359 = vpop.trf.xlu0
    %v1360 = vpop.trf.xlu0
    %v1361 = vpop.trf.xlu0
    %v1362 = vpop.trf.xlu0
    %v1363 = vpop.trf.xlu0
    %v1364 = vpop.trf.xlu0
    %v1365 = vpop.trf.xlu0
    %v1366 = vpop.trf.xlu0
    %v1367 = vpop.trf.xlu0
    %v1368 = vpop.trf.xlu0
    %v1369 = vpop.trf.xlu0
    %1370 = vxpose.xlu0.b32.start [1/16] %v1146, 128
    %1371 = vxpose.xlu0.b32.cont [2/16] %v1147, 128
    %1372 = vxpose.xlu0.b32.cont [3/16] %v1148, 128
    %1373 = vxpose.xlu0.b32.cont [4/16] %v1149, 128
    %1374 = vxpose.xlu0.b32.cont [5/16] %v1150, 128
    %1375 = vxpose.xlu0.b32.cont [6/16] %v1151, 128
    %1376 = vxpose.xlu0.b32.cont [7/16] %v1152, 128
    %1377 = vxpose.xlu0.b32.cont [8/16] %v1153, 128
    %1378 = vxpose.xlu0.b32.cont [9/16] %v1154, 128
    %1379 = vxpose.xlu0.b32.cont [10/16] %v1155, 128
    %1380 = vxpose.xlu0.b32.cont [11/16] %v1156, 128
    %1381 = vxpose.xlu0.b32.cont [12/16] %v1157, 128
    %1382 = vxpose.xlu0.b32.cont [13/16] %v1158, 128
    %1383 = vxpose.xlu0.b32.cont [14/16] %v1159, 128
    %1384 = vxpose.xlu0.b32.cont [15/16] %v1160, 128
    %1385 = vxpose.xlu0.b32.end [16/16] %v1161, 128
    %v1386 = vpop.trf.xlu0
    %v1387 = vpop.trf.xlu0
    %v1388 = vpop.trf.xlu0
    %v1389 = vpop.trf.xlu0
    %v1390 = vpop.trf.xlu0
    %v1391 = vpop.trf.xlu0
    %v1392 = vpop.trf.xlu0
    %v1393 = vpop.trf.xlu0
    %v1394 = vpop.trf.xlu0
    %v1395 = vpop.trf.xlu0
    %v1396 = vpop.trf.xlu0
    %v1397 = vpop.trf.xlu0
    %v1398 = vpop.trf.xlu0
    %v1399 = vpop.trf.xlu0
    %v1400 = vpop.trf.xlu0
    %v1401 = vpop.trf.xlu0
    %1402 = vxpose.xlu0.b32.start [1/16] %v1162, 128
    %1403 = vxpose.xlu0.b32.cont [2/16] %v1163, 128
    %1404 = vxpose.xlu0.b32.cont [3/16] %v1164, 128
    %1405 = vxpose.xlu0.b32.cont [4/16] %v1165, 128
    %1406 = vxpose.xlu0.b32.cont [5/16] %v1166, 128
    %1407 = vxpose.xlu0.b32.cont [6/16] %v1167, 128
    %1408 = vxpose.xlu0.b32.cont [7/16] %v1168, 128
    %1409 = vxpose.xlu0.b32.cont [8/16] %v1169, 128
    %1410 = vxpose.xlu0.b32.cont [9/16] %v1170, 128
    %1411 = vxpose.xlu0.b32.cont [10/16] %v1171, 128
    %1412 = vxpose.xlu0.b32.cont [11/16] %v1172, 128
    %1413 = vxpose.xlu0.b32.cont [12/16] %v1173, 128
    %1414 = vxpose.xlu0.b32.cont [13/16] %v1174, 128
    %1415 = vxpose.xlu0.b32.cont [14/16] %v1175, 128
    %1416 = vxpose.xlu0.b32.cont [15/16] %v1176, 128
    %1417 = vxpose.xlu0.b32.end [16/16] %v1177, 128
    %v1418 = vpop.trf.xlu0
    %v1419 = vpop.trf.xlu0
    %v1420 = vpop.trf.xlu0
    %v1421 = vpop.trf.xlu0
    %v1422 = vpop.trf.xlu0
    %v1423 = vpop.trf.xlu0
    %v1424 = vpop.trf.xlu0
    %v1425 = vpop.trf.xlu0
    %v1426 = vpop.trf.xlu0
    %v1427 = vpop.trf.xlu0
    %v1428 = vpop.trf.xlu0
    %v1429 = vpop.trf.xlu0
    %v1430 = vpop.trf.xlu0
    %v1431 = vpop.trf.xlu0
    %v1432 = vpop.trf.xlu0
    %v1433 = vpop.trf.xlu0
    %s1434 = scalar_lea.vmem [#allocation5], 2048
    %1435 = vst [vmem:[%s1434] sm:$0xff] %v1194
    %1436 = vst [vmem:[%s1434 + $0x8] sm:$0xff] %v1226
    %1437 = vst [vmem:[%s1434 + $0x10] sm:$0xff] %v1258
    %1438 = vst [vmem:[%s1434 + $0x18] sm:$0xff] %v1290
    %1439 = vst [vmem:[%s1434 + $0x20] sm:$0xff] %v1322
    %1440 = vst [vmem:[%s1434 + $0x28] sm:$0xff] %v1354
    %1441 = vst [vmem:[%s1434 + $0x30] sm:$0xff] %v1386
    %1442 = vst [vmem:[%s1434 + $0x38] sm:$0xff] %v1418
    %1443 = vst [vmem:[%s1434 + $0x40] sm:$0xff] %v1195
    %1444 = vst [vmem:[%s1434 + $0x48] sm:$0xff] %v1227
    %1445 = vst [vmem:[%s1434 + $0x50] sm:$0xff] %v1259
    %1446 = vst [vmem:[%s1434 + $0x58] sm:$0xff] %v1291
    %1447 = vst [vmem:[%s1434 + $0x60] sm:$0xff] %v1323
    %1448 = vst [vmem:[%s1434 + $0x68] sm:$0xff] %v1355
    %1449 = vst [vmem:[%s1434 + $0x70] sm:$0xff] %v1387
    %1450 = vst [vmem:[%s1434 + $0x78] sm:$0xff] %v1419
    %1451 = vst [vmem:[%s1434 + $0x80] sm:$0xff] %v1196
    %1452 = vst [vmem:[%s1434 + $0x88] sm:$0xff] %v1228
    %1453 = vst [vmem:[%s1434 + $0x90] sm:$0xff] %v1260
    %1454 = vst [vmem:[%s1434 + $0x98] sm:$0xff] %v1292
    %1455 = vst [vmem:[%s1434 + $0xa0] sm:$0xff] %v1324
    %1456 = vst [vmem:[%s1434 + $0xa8] sm:$0xff] %v1356
    %1457 = vst [vmem:[%s1434 + $0xb0] sm:$0xff] %v1388
    %1458 = vst [vmem:[%s1434 + $0xb8] sm:$0xff] %v1420
    %1459 = vst [vmem:[%s1434 + $0xc0] sm:$0xff] %v1197
    %1460 = vst [vmem:[%s1434 + $0xc8] sm:$0xff] %v1229
    %1461 = vst [vmem:[%s1434 + $0xd0] sm:$0xff] %v1261
    %1462 = vst [vmem:[%s1434 + $0xd8] sm:$0xff] %v1293
    %1463 = vst [vmem:[%s1434 + $0xe0] sm:$0xff] %v1325
    %1464 = vst [vmem:[%s1434 + $0xe8] sm:$0xff] %v1357
    %1465 = vst [vmem:[%s1434 + $0xf0] sm:$0xff] %v1389
    %1466 = vst [vmem:[%s1434 + $0xf8] sm:$0xff] %v1421
    %1467 = vst [vmem:[%s1434 + $0x100] sm:$0xff] %v1198
    %1468 = vst [vmem:[%s1434 + $0x108] sm:$0xff] %v1230
    %1469 = vst [vmem:[%s1434 + $0x110] sm:$0xff] %v1262
    %1470 = vst [vmem:[%s1434 + $0x118] sm:$0xff] %v1294
    %1471 = vst [vmem:[%s1434 + $0x120] sm:$0xff] %v1326
    %1472 = vst [vmem:[%s1434 + $0x128] sm:$0xff] %v1358
    %1473 = vst [vmem:[%s1434 + $0x130] sm:$0xff] %v1390
    %1474 = vst [vmem:[%s1434 + $0x138] sm:$0xff] %v1422
    %1475 = vst [vmem:[%s1434 + $0x140] sm:$0xff] %v1199
    %1476 = vst [vmem:[%s1434 + $0x148] sm:$0xff] %v1231
    %1477 = vst [vmem:[%s1434 + $0x150] sm:$0xff] %v1263
    %1478 = vst [vmem:[%s1434 + $0x158] sm:$0xff] %v1295
    %1479 = vst [vmem:[%s1434 + $0x160] sm:$0xff] %v1327
    %1480 = vst [vmem:[%s1434 + $0x168] sm:$0xff] %v1359
    %1481 = vst [vmem:[%s1434 + $0x170] sm:$0xff] %v1391
    %1482 = vst [vmem:[%s1434 + $0x178] sm:$0xff] %v1423
    %1483 = vst [vmem:[%s1434 + $0x180] sm:$0xff] %v1200
    %1484 = vst [vmem:[%s1434 + $0x188] sm:$0xff] %v1232
    %1485 = vst [vmem:[%s1434 + $0x190] sm:$0xff] %v1264
    %1486 = vst [vmem:[%s1434 + $0x198] sm:$0xff] %v1296
    %1487 = vst [vmem:[%s1434 + $0x1a0] sm:$0xff] %v1328
    %1488 = vst [vmem:[%s1434 + $0x1a8] sm:$0xff] %v1360
    %1489 = vst [vmem:[%s1434 + $0x1b0] sm:$0xff] %v1392
    %1490 = vst [vmem:[%s1434 + $0x1b8] sm:$0xff] %v1424
    %1491 = vst [vmem:[%s1434 + $0x1c0] sm:$0xff] %v1201
    %1492 = vst [vmem:[%s1434 + $0x1c8] sm:$0xff] %v1233
    %1493 = vst [vmem:[%s1434 + $0x1d0] sm:$0xff] %v1265
    %1494 = vst [vmem:[%s1434 + $0x1d8] sm:$0xff] %v1297
    %1495 = vst [vmem:[%s1434 + $0x1e0] sm:$0xff] %v1329
    %1496 = vst [vmem:[%s1434 + $0x1e8] sm:$0xff] %v1361
    %1497 = vst [vmem:[%s1434 + $0x1f0] sm:$0xff] %v1393
    %1498 = vst [vmem:[%s1434 + $0x1f8] sm:$0xff] %v1425
    %1499 = vst [vmem:[%s1434 + $0x200] sm:$0xff] %v1202
    %1500 = vst [vmem:[%s1434 + $0x208] sm:$0xff] %v1234
    %1501 = vst [vmem:[%s1434 + $0x210] sm:$0xff] %v1266
    %1502 = vst [vmem:[%s1434 + $0x218] sm:$0xff] %v1298
    %1503 = vst [vmem:[%s1434 + $0x220] sm:$0xff] %v1330
    %1504 = vst [vmem:[%s1434 + $0x228] sm:$0xff] %v1362
    %1505 = vst [vmem:[%s1434 + $0x230] sm:$0xff] %v1394
    %1506 = vst [vmem:[%s1434 + $0x238] sm:$0xff] %v1426
    %1507 = vst [vmem:[%s1434 + $0x240] sm:$0xff] %v1203
    %1508 = vst [vmem:[%s1434 + $0x248] sm:$0xff] %v1235
    %1509 = vst [vmem:[%s1434 + $0x250] sm:$0xff] %v1267
    %1510 = vst [vmem:[%s1434 + $0x258] sm:$0xff] %v1299
    %1511 = vst [vmem:[%s1434 + $0x260] sm:$0xff] %v1331
    %1512 = vst [vmem:[%s1434 + $0x268] sm:$0xff] %v1363
    %1513 = vst [vmem:[%s1434 + $0x270] sm:$0xff] %v1395
    %1514 = vst [vmem:[%s1434 + $0x278] sm:$0xff] %v1427
    %1515 = vst [vmem:[%s1434 + $0x280] sm:$0xff] %v1204
    %1516 = vst [vmem:[%s1434 + $0x288] sm:$0xff] %v1236
    %1517 = vst [vmem:[%s1434 + $0x290] sm:$0xff] %v1268
    %1518 = vst [vmem:[%s1434 + $0x298] sm:$0xff] %v1300
    %1519 = vst [vmem:[%s1434 + $0x2a0] sm:$0xff] %v1332
    %1520 = vst [vmem:[%s1434 + $0x2a8] sm:$0xff] %v1364
    %1521 = vst [vmem:[%s1434 + $0x2b0] sm:$0xff] %v1396
    %1522 = vst [vmem:[%s1434 + $0x2b8] sm:$0xff] %v1428
    %1523 = vst [vmem:[%s1434 + $0x2c0] sm:$0xff] %v1205
    %1524 = vst [vmem:[%s1434 + $0x2c8] sm:$0xff] %v1237
    %1525 = vst [vmem:[%s1434 + $0x2d0] sm:$0xff] %v1269
    %1526 = vst [vmem:[%s1434 + $0x2d8] sm:$0xff] %v1301
    %1527 = vst [vmem:[%s1434 + $0x2e0] sm:$0xff] %v1333
    %1528 = vst [vmem:[%s1434 + $0x2e8] sm:$0xff] %v1365
    %1529 = vst [vmem:[%s1434 + $0x2f0] sm:$0xff] %v1397
    %1530 = vst [vmem:[%s1434 + $0x2f8] sm:$0xff] %v1429
    %1531 = vst [vmem:[%s1434 + $0x300] sm:$0xff] %v1206
    %1532 = vst [vmem:[%s1434 + $0x308] sm:$0xff] %v1238
    %1533 = vst [vmem:[%s1434 + $0x310] sm:$0xff] %v1270
    %1534 = vst [vmem:[%s1434 + $0x318] sm:$0xff] %v1302
    %1535 = vst [vmem:[%s1434 + $0x320] sm:$0xff] %v1334
    %1536 = vst [vmem:[%s1434 + $0x328] sm:$0xff] %v1366
    %1537 = vst [vmem:[%s1434 + $0x330] sm:$0xff] %v1398
    %1538 = vst [vmem:[%s1434 + $0x338] sm:$0xff] %v1430
    %1539 = vst [vmem:[%s1434 + $0x340] sm:$0xff] %v1207
    %1540 = vst [vmem:[%s1434 + $0x348] sm:$0xff] %v1239
    %1541 = vst [vmem:[%s1434 + $0x350] sm:$0xff] %v1271
    %1542 = vst [vmem:[%s1434 + $0x358] sm:$0xff] %v1303
    %1543 = vst [vmem:[%s1434 + $0x360] sm:$0xff] %v1335
    %1544 = vst [vmem:[%s1434 + $0x368] sm:$0xff] %v1367
    %1545 = vst [vmem:[%s1434 + $0x370] sm:$0xff] %v1399
    %1546 = vst [vmem:[%s1434 + $0x378] sm:$0xff] %v1431
    %1547 = vst [vmem:[%s1434 + $0x380] sm:$0xff] %v1208
    %1548 = vst [vmem:[%s1434 + $0x388] sm:$0xff] %v1240
    %1549 = vst [vmem:[%s1434 + $0x390] sm:$0xff] %v1272
    %1550 = vst [vmem:[%s1434 + $0x398] sm:$0xff] %v1304
    %1551 = vst [vmem:[%s1434 + $0x3a0] sm:$0xff] %v1336
    %1552 = vst [vmem:[%s1434 + $0x3a8] sm:$0xff] %v1368
    %1553 = vst [vmem:[%s1434 + $0x3b0] sm:$0xff] %v1400
    %1554 = vst [vmem:[%s1434 + $0x3b8] sm:$0xff] %v1432
    %1555 = vst [vmem:[%s1434 + $0x3c0] sm:$0xff] %v1209
    %1556 = vst [vmem:[%s1434 + $0x3c8] sm:$0xff] %v1241
    %1557 = vst [vmem:[%s1434 + $0x3d0] sm:$0xff] %v1273
    %1558 = vst [vmem:[%s1434 + $0x3d8] sm:$0xff] %v1305
    %1559 = vst [vmem:[%s1434 + $0x3e0] sm:$0xff] %v1337
    %1560 = vst [vmem:[%s1434 + $0x3e8] sm:$0xff] %v1369
    %1561 = vst [vmem:[%s1434 + $0x3f0] sm:$0xff] %v1401
    %1562 = vst [vmem:[%s1434 + $0x3f8] sm:$0xff] %v1433
    %s1563 = scalar_lea.vmem [#allocation2], 3072
    %v1564 = vld [vmem:[%s1563] sm:$0xff]
    %v1565 = vld [vmem:[%s1563 + $0x8] sm:$0xff]
    %v1566 = vld [vmem:[%s1563 + $0x10] sm:$0xff]
    %v1567 = vld [vmem:[%s1563 + $0x18] sm:$0xff]
    %v1568 = vld [vmem:[%s1563 + $0x20] sm:$0xff]
    %v1569 = vld [vmem:[%s1563 + $0x28] sm:$0xff]
    %v1570 = vld [vmem:[%s1563 + $0x30] sm:$0xff]
    %v1571 = vld [vmem:[%s1563 + $0x38] sm:$0xff]
    %v1572 = vld [vmem:[%s1563 + $0x40] sm:$0xff]
    %v1573 = vld [vmem:[%s1563 + $0x48] sm:$0xff]
    %v1574 = vld [vmem:[%s1563 + $0x50] sm:$0xff]
    %v1575 = vld [vmem:[%s1563 + $0x58] sm:$0xff]
    %v1576 = vld [vmem:[%s1563 + $0x60] sm:$0xff]
    %v1577 = vld [vmem:[%s1563 + $0x68] sm:$0xff]
    %v1578 = vld [vmem:[%s1563 + $0x70] sm:$0xff]
    %v1579 = vld [vmem:[%s1563 + $0x78] sm:$0xff]
    %v1580 = vld [vmem:[%s1563 + $0x80] sm:$0xff]
    %v1581 = vld [vmem:[%s1563 + $0x88] sm:$0xff]
    %v1582 = vld [vmem:[%s1563 + $0x90] sm:$0xff]
    %v1583 = vld [vmem:[%s1563 + $0x98] sm:$0xff]
    %v1584 = vld [vmem:[%s1563 + $0xa0] sm:$0xff]
    %v1585 = vld [vmem:[%s1563 + $0xa8] sm:$0xff]
    %v1586 = vld [vmem:[%s1563 + $0xb0] sm:$0xff]
    %v1587 = vld [vmem:[%s1563 + $0xb8] sm:$0xff]
    %v1588 = vld [vmem:[%s1563 + $0xc0] sm:$0xff]
    %v1589 = vld [vmem:[%s1563 + $0xc8] sm:$0xff]
    %v1590 = vld [vmem:[%s1563 + $0xd0] sm:$0xff]
    %v1591 = vld [vmem:[%s1563 + $0xd8] sm:$0xff]
    %v1592 = vld [vmem:[%s1563 + $0xe0] sm:$0xff]
    %v1593 = vld [vmem:[%s1563 + $0xe8] sm:$0xff]
    %v1594 = vld [vmem:[%s1563 + $0xf0] sm:$0xff]
    %v1595 = vld [vmem:[%s1563 + $0xf8] sm:$0xff]
    %v1596 = vld [vmem:[%s1563 + $0x100] sm:$0xff]
    %v1597 = vld [vmem:[%s1563 + $0x108] sm:$0xff]
    %v1598 = vld [vmem:[%s1563 + $0x110] sm:$0xff]
    %v1599 = vld [vmem:[%s1563 + $0x118] sm:$0xff]
    %v1600 = vld [vmem:[%s1563 + $0x120] sm:$0xff]
    %v1601 = vld [vmem:[%s1563 + $0x128] sm:$0xff]
    %v1602 = vld [vmem:[%s1563 + $0x130] sm:$0xff]
    %v1603 = vld [vmem:[%s1563 + $0x138] sm:$0xff]
    %v1604 = vld [vmem:[%s1563 + $0x140] sm:$0xff]
    %v1605 = vld [vmem:[%s1563 + $0x148] sm:$0xff]
    %v1606 = vld [vmem:[%s1563 + $0x150] sm:$0xff]
    %v1607 = vld [vmem:[%s1563 + $0x158] sm:$0xff]
    %v1608 = vld [vmem:[%s1563 + $0x160] sm:$0xff]
    %v1609 = vld [vmem:[%s1563 + $0x168] sm:$0xff]
    %v1610 = vld [vmem:[%s1563 + $0x170] sm:$0xff]
    %v1611 = vld [vmem:[%s1563 + $0x178] sm:$0xff]
    %v1612 = vld [vmem:[%s1563 + $0x180] sm:$0xff]
    %v1613 = vld [vmem:[%s1563 + $0x188] sm:$0xff]
    %v1614 = vld [vmem:[%s1563 + $0x190] sm:$0xff]
    %v1615 = vld [vmem:[%s1563 + $0x198] sm:$0xff]
    %v1616 = vld [vmem:[%s1563 + $0x1a0] sm:$0xff]
    %v1617 = vld [vmem:[%s1563 + $0x1a8] sm:$0xff]
    %v1618 = vld [vmem:[%s1563 + $0x1b0] sm:$0xff]
    %v1619 = vld [vmem:[%s1563 + $0x1b8] sm:$0xff]
    %v1620 = vld [vmem:[%s1563 + $0x1c0] sm:$0xff]
    %v1621 = vld [vmem:[%s1563 + $0x1c8] sm:$0xff]
    %v1622 = vld [vmem:[%s1563 + $0x1d0] sm:$0xff]
    %v1623 = vld [vmem:[%s1563 + $0x1d8] sm:$0xff]
    %v1624 = vld [vmem:[%s1563 + $0x1e0] sm:$0xff]
    %v1625 = vld [vmem:[%s1563 + $0x1e8] sm:$0xff]
    %v1626 = vld [vmem:[%s1563 + $0x1f0] sm:$0xff]
    %v1627 = vld [vmem:[%s1563 + $0x1f8] sm:$0xff]
    %v1628 = vld [vmem:[%s1563 + $0x200] sm:$0xff]
    %v1629 = vld [vmem:[%s1563 + $0x208] sm:$0xff]
    %v1630 = vld [vmem:[%s1563 + $0x210] sm:$0xff]
    %v1631 = vld [vmem:[%s1563 + $0x218] sm:$0xff]
    %v1632 = vld [vmem:[%s1563 + $0x220] sm:$0xff]
    %v1633 = vld [vmem:[%s1563 + $0x228] sm:$0xff]
    %v1634 = vld [vmem:[%s1563 + $0x230] sm:$0xff]
    %v1635 = vld [vmem:[%s1563 + $0x238] sm:$0xff]
    %v1636 = vld [vmem:[%s1563 + $0x240] sm:$0xff]
    %v1637 = vld [vmem:[%s1563 + $0x248] sm:$0xff]
    %v1638 = vld [vmem:[%s1563 + $0x250] sm:$0xff]
    %v1639 = vld [vmem:[%s1563 + $0x258] sm:$0xff]
    %v1640 = vld [vmem:[%s1563 + $0x260] sm:$0xff]
    %v1641 = vld [vmem:[%s1563 + $0x268] sm:$0xff]
    %v1642 = vld [vmem:[%s1563 + $0x270] sm:$0xff]
    %v1643 = vld [vmem:[%s1563 + $0x278] sm:$0xff]
    %v1644 = vld [vmem:[%s1563 + $0x280] sm:$0xff]
    %v1645 = vld [vmem:[%s1563 + $0x288] sm:$0xff]
    %v1646 = vld [vmem:[%s1563 + $0x290] sm:$0xff]
    %v1647 = vld [vmem:[%s1563 + $0x298] sm:$0xff]
    %v1648 = vld [vmem:[%s1563 + $0x2a0] sm:$0xff]
    %v1649 = vld [vmem:[%s1563 + $0x2a8] sm:$0xff]
    %v1650 = vld [vmem:[%s1563 + $0x2b0] sm:$0xff]
    %v1651 = vld [vmem:[%s1563 + $0x2b8] sm:$0xff]
    %v1652 = vld [vmem:[%s1563 + $0x2c0] sm:$0xff]
    %v1653 = vld [vmem:[%s1563 + $0x2c8] sm:$0xff]
    %v1654 = vld [vmem:[%s1563 + $0x2d0] sm:$0xff]
    %v1655 = vld [vmem:[%s1563 + $0x2d8] sm:$0xff]
    %v1656 = vld [vmem:[%s1563 + $0x2e0] sm:$0xff]
    %v1657 = vld [vmem:[%s1563 + $0x2e8] sm:$0xff]
    %v1658 = vld [vmem:[%s1563 + $0x2f0] sm:$0xff]
    %v1659 = vld [vmem:[%s1563 + $0x2f8] sm:$0xff]
    %v1660 = vld [vmem:[%s1563 + $0x300] sm:$0xff]
    %v1661 = vld [vmem:[%s1563 + $0x308] sm:$0xff]
    %v1662 = vld [vmem:[%s1563 + $0x310] sm:$0xff]
    %v1663 = vld [vmem:[%s1563 + $0x318] sm:$0xff]
    %v1664 = vld [vmem:[%s1563 + $0x320] sm:$0xff]
    %v1665 = vld [vmem:[%s1563 + $0x328] sm:$0xff]
    %v1666 = vld [vmem:[%s1563 + $0x330] sm:$0xff]
    %v1667 = vld [vmem:[%s1563 + $0x338] sm:$0xff]
    %v1668 = vld [vmem:[%s1563 + $0x340] sm:$0xff]
    %v1669 = vld [vmem:[%s1563 + $0x348] sm:$0xff]
    %v1670 = vld [vmem:[%s1563 + $0x350] sm:$0xff]
    %v1671 = vld [vmem:[%s1563 + $0x358] sm:$0xff]
    %v1672 = vld [vmem:[%s1563 + $0x360] sm:$0xff]
    %v1673 = vld [vmem:[%s1563 + $0x368] sm:$0xff]
    %v1674 = vld [vmem:[%s1563 + $0x370] sm:$0xff]
    %v1675 = vld [vmem:[%s1563 + $0x378] sm:$0xff]
    %v1676 = vld [vmem:[%s1563 + $0x380] sm:$0xff]
    %v1677 = vld [vmem:[%s1563 + $0x388] sm:$0xff]
    %v1678 = vld [vmem:[%s1563 + $0x390] sm:$0xff]
    %v1679 = vld [vmem:[%s1563 + $0x398] sm:$0xff]
    %v1680 = vld [vmem:[%s1563 + $0x3a0] sm:$0xff]
    %v1681 = vld [vmem:[%s1563 + $0x3a8] sm:$0xff]
    %v1682 = vld [vmem:[%s1563 + $0x3b0] sm:$0xff]
    %v1683 = vld [vmem:[%s1563 + $0x3b8] sm:$0xff]
    %v1684 = vld [vmem:[%s1563 + $0x3c0] sm:$0xff]
    %v1685 = vld [vmem:[%s1563 + $0x3c8] sm:$0xff]
    %v1686 = vld [vmem:[%s1563 + $0x3d0] sm:$0xff]
    %v1687 = vld [vmem:[%s1563 + $0x3d8] sm:$0xff]
    %v1688 = vld [vmem:[%s1563 + $0x3e0] sm:$0xff]
    %v1689 = vld [vmem:[%s1563 + $0x3e8] sm:$0xff]
    %v1690 = vld [vmem:[%s1563 + $0x3f0] sm:$0xff]
    %v1691 = vld [vmem:[%s1563 + $0x3f8] sm:$0xff]
    %1692 = vxpose.xlu0.b32.start [1/16] %v1564, 128
    %1693 = vxpose.xlu0.b32.cont [2/16] %v1565, 128
    %1694 = vxpose.xlu0.b32.cont [3/16] %v1566, 128
    %1695 = vxpose.xlu0.b32.cont [4/16] %v1567, 128
    %1696 = vxpose.xlu0.b32.cont [5/16] %v1568, 128
    %1697 = vxpose.xlu0.b32.cont [6/16] %v1569, 128
    %1698 = vxpose.xlu0.b32.cont [7/16] %v1570, 128
    %1699 = vxpose.xlu0.b32.cont [8/16] %v1571, 128
    %1700 = vxpose.xlu0.b32.cont [9/16] %v1572, 128
    %1701 = vxpose.xlu0.b32.cont [10/16] %v1573, 128
    %1702 = vxpose.xlu0.b32.cont [11/16] %v1574, 128
    %1703 = vxpose.xlu0.b32.cont [12/16] %v1575, 128
    %1704 = vxpose.xlu0.b32.cont [13/16] %v1576, 128
    %1705 = vxpose.xlu0.b32.cont [14/16] %v1577, 128
    %1706 = vxpose.xlu0.b32.cont [15/16] %v1578, 128
    %1707 = vxpose.xlu0.b32.end [16/16] %v1579, 128
    %v1708 = vpop.trf.xlu0
    %v1709 = vpop.trf.xlu0
    %v1710 = vpop.trf.xlu0
    %v1711 = vpop.trf.xlu0
    %v1712 = vpop.trf.xlu0
    %v1713 = vpop.trf.xlu0
    %v1714 = vpop.trf.xlu0
    %v1715 = vpop.trf.xlu0
    %v1716 = vpop.trf.xlu0
    %v1717 = vpop.trf.xlu0
    %v1718 = vpop.trf.xlu0
    %v1719 = vpop.trf.xlu0
    %v1720 = vpop.trf.xlu0
    %v1721 = vpop.trf.xlu0
    %v1722 = vpop.trf.xlu0
    %v1723 = vpop.trf.xlu0
    %1724 = vxpose.xlu0.b32.start [1/16] %v1580, 128
    %1725 = vxpose.xlu0.b32.cont [2/16] %v1581, 128
    %1726 = vxpose.xlu0.b32.cont [3/16] %v1582, 128
    %1727 = vxpose.xlu0.b32.cont [4/16] %v1583, 128
    %1728 = vxpose.xlu0.b32.cont [5/16] %v1584, 128
    %1729 = vxpose.xlu0.b32.cont [6/16] %v1585, 128
    %1730 = vxpose.xlu0.b32.cont [7/16] %v1586, 128
    %1731 = vxpose.xlu0.b32.cont [8/16] %v1587, 128
    %1732 = vxpose.xlu0.b32.cont [9/16] %v1588, 128
    %1733 = vxpose.xlu0.b32.cont [10/16] %v1589, 128
    %1734 = vxpose.xlu0.b32.cont [11/16] %v1590, 128
    %1735 = vxpose.xlu0.b32.cont [12/16] %v1591, 128
    %1736 = vxpose.xlu0.b32.cont [13/16] %v1592, 128
    %1737 = vxpose.xlu0.b32.cont [14/16] %v1593, 128
    %1738 = vxpose.xlu0.b32.cont [15/16] %v1594, 128
    %1739 = vxpose.xlu0.b32.end [16/16] %v1595, 128
    %v1740 = vpop.trf.xlu0
    %v1741 = vpop.trf.xlu0
    %v1742 = vpop.trf.xlu0
    %v1743 = vpop.trf.xlu0
    %v1744 = vpop.trf.xlu0
    %v1745 = vpop.trf.xlu0
    %v1746 = vpop.trf.xlu0
    %v1747 = vpop.trf.xlu0
    %v1748 = vpop.trf.xlu0
    %v1749 = vpop.trf.xlu0
    %v1750 = vpop.trf.xlu0
    %v1751 = vpop.trf.xlu0
    %v1752 = vpop.trf.xlu0
    %v1753 = vpop.trf.xlu0
    %v1754 = vpop.trf.xlu0
    %v1755 = vpop.trf.xlu0
    %1756 = vxpose.xlu0.b32.start [1/16] %v1596, 128
    %1757 = vxpose.xlu0.b32.cont [2/16] %v1597, 128
    %1758 = vxpose.xlu0.b32.cont [3/16] %v1598, 128
    %1759 = vxpose.xlu0.b32.cont [4/16] %v1599, 128
    %1760 = vxpose.xlu0.b32.cont [5/16] %v1600, 128
    %1761 = vxpose.xlu0.b32.cont [6/16] %v1601, 128
    %1762 = vxpose.xlu0.b32.cont [7/16] %v1602, 128
    %1763 = vxpose.xlu0.b32.cont [8/16] %v1603, 128
    %1764 = vxpose.xlu0.b32.cont [9/16] %v1604, 128
    %1765 = vxpose.xlu0.b32.cont [10/16] %v1605, 128
    %1766 = vxpose.xlu0.b32.cont [11/16] %v1606, 128
    %1767 = vxpose.xlu0.b32.cont [12/16] %v1607, 128
    %1768 = vxpose.xlu0.b32.cont [13/16] %v1608, 128
    %1769 = vxpose.xlu0.b32.cont [14/16] %v1609, 128
    %1770 = vxpose.xlu0.b32.cont [15/16] %v1610, 128
    %1771 = vxpose.xlu0.b32.end [16/16] %v1611, 128
    %v1772 = vpop.trf.xlu0
    %v1773 = vpop.trf.xlu0
    %v1774 = vpop.trf.xlu0
    %v1775 = vpop.trf.xlu0
    %v1776 = vpop.trf.xlu0
    %v1777 = vpop.trf.xlu0
    %v1778 = vpop.trf.xlu0
    %v1779 = vpop.trf.xlu0
    %v1780 = vpop.trf.xlu0
    %v1781 = vpop.trf.xlu0
    %v1782 = vpop.trf.xlu0
    %v1783 = vpop.trf.xlu0
    %v1784 = vpop.trf.xlu0
    %v1785 = vpop.trf.xlu0
    %v1786 = vpop.trf.xlu0
    %v1787 = vpop.trf.xlu0
    %1788 = vxpose.xlu0.b32.start [1/16] %v1612, 128
    %1789 = vxpose.xlu0.b32.cont [2/16] %v1613, 128
    %1790 = vxpose.xlu0.b32.cont [3/16] %v1614, 128
    %1791 = vxpose.xlu0.b32.cont [4/16] %v1615, 128
    %1792 = vxpose.xlu0.b32.cont [5/16] %v1616, 128
    %1793 = vxpose.xlu0.b32.cont [6/16] %v1617, 128
    %1794 = vxpose.xlu0.b32.cont [7/16] %v1618, 128
    %1795 = vxpose.xlu0.b32.cont [8/16] %v1619, 128
    %1796 = vxpose.xlu0.b32.cont [9/16] %v1620, 128
    %1797 = vxpose.xlu0.b32.cont [10/16] %v1621, 128
    %1798 = vxpose.xlu0.b32.cont [11/16] %v1622, 128
    %1799 = vxpose.xlu0.b32.cont [12/16] %v1623, 128
    %1800 = vxpose.xlu0.b32.cont [13/16] %v1624, 128
    %1801 = vxpose.xlu0.b32.cont [14/16] %v1625, 128
    %1802 = vxpose.xlu0.b32.cont [15/16] %v1626, 128
    %1803 = vxpose.xlu0.b32.end [16/16] %v1627, 128
    %v1804 = vpop.trf.xlu0
    %v1805 = vpop.trf.xlu0
    %v1806 = vpop.trf.xlu0
    %v1807 = vpop.trf.xlu0
    %v1808 = vpop.trf.xlu0
    %v1809 = vpop.trf.xlu0
    %v1810 = vpop.trf.xlu0
    %v1811 = vpop.trf.xlu0
    %v1812 = vpop.trf.xlu0
    %v1813 = vpop.trf.xlu0
    %v1814 = vpop.trf.xlu0
    %v1815 = vpop.trf.xlu0
    %v1816 = vpop.trf.xlu0
    %v1817 = vpop.trf.xlu0
    %v1818 = vpop.trf.xlu0
    %v1819 = vpop.trf.xlu0
    %1820 = vxpose.xlu0.b32.start [1/16] %v1628, 128
    %1821 = vxpose.xlu0.b32.cont [2/16] %v1629, 128
    %1822 = vxpose.xlu0.b32.cont [3/16] %v1630, 128
    %1823 = vxpose.xlu0.b32.cont [4/16] %v1631, 128
    %1824 = vxpose.xlu0.b32.cont [5/16] %v1632, 128
    %1825 = vxpose.xlu0.b32.cont [6/16] %v1633, 128
    %1826 = vxpose.xlu0.b32.cont [7/16] %v1634, 128
    %1827 = vxpose.xlu0.b32.cont [8/16] %v1635, 128
    %1828 = vxpose.xlu0.b32.cont [9/16] %v1636, 128
    %1829 = vxpose.xlu0.b32.cont [10/16] %v1637, 128
    %1830 = vxpose.xlu0.b32.cont [11/16] %v1638, 128
    %1831 = vxpose.xlu0.b32.cont [12/16] %v1639, 128
    %1832 = vxpose.xlu0.b32.cont [13/16] %v1640, 128
    %1833 = vxpose.xlu0.b32.cont [14/16] %v1641, 128
    %1834 = vxpose.xlu0.b32.cont [15/16] %v1642, 128
    %1835 = vxpose.xlu0.b32.end [16/16] %v1643, 128
    %v1836 = vpop.trf.xlu0
    %v1837 = vpop.trf.xlu0
    %v1838 = vpop.trf.xlu0
    %v1839 = vpop.trf.xlu0
    %v1840 = vpop.trf.xlu0
    %v1841 = vpop.trf.xlu0
    %v1842 = vpop.trf.xlu0
    %v1843 = vpop.trf.xlu0
    %v1844 = vpop.trf.xlu0
    %v1845 = vpop.trf.xlu0
    %v1846 = vpop.trf.xlu0
    %v1847 = vpop.trf.xlu0
    %v1848 = vpop.trf.xlu0
    %v1849 = vpop.trf.xlu0
    %v1850 = vpop.trf.xlu0
    %v1851 = vpop.trf.xlu0
    %1852 = vxpose.xlu0.b32.start [1/16] %v1644, 128
    %1853 = vxpose.xlu0.b32.cont [2/16] %v1645, 128
    %1854 = vxpose.xlu0.b32.cont [3/16] %v1646, 128
    %1855 = vxpose.xlu0.b32.cont [4/16] %v1647, 128
    %1856 = vxpose.xlu0.b32.cont [5/16] %v1648, 128
    %1857 = vxpose.xlu0.b32.cont [6/16] %v1649, 128
    %1858 = vxpose.xlu0.b32.cont [7/16] %v1650, 128
    %1859 = vxpose.xlu0.b32.cont [8/16] %v1651, 128
    %1860 = vxpose.xlu0.b32.cont [9/16] %v1652, 128
    %1861 = vxpose.xlu0.b32.cont [10/16] %v1653, 128
    %1862 = vxpose.xlu0.b32.cont [11/16] %v1654, 128
    %1863 = vxpose.xlu0.b32.cont [12/16] %v1655, 128
    %1864 = vxpose.xlu0.b32.cont [13/16] %v1656, 128
    %1865 = vxpose.xlu0.b32.cont [14/16] %v1657, 128
    %1866 = vxpose.xlu0.b32.cont [15/16] %v1658, 128
    %1867 = vxpose.xlu0.b32.end [16/16] %v1659, 128
    %v1868 = vpop.trf.xlu0
    %v1869 = vpop.trf.xlu0
    %v1870 = vpop.trf.xlu0
    %v1871 = vpop.trf.xlu0
    %v1872 = vpop.trf.xlu0
    %v1873 = vpop.trf.xlu0
    %v1874 = vpop.trf.xlu0
    %v1875 = vpop.trf.xlu0
    %v1876 = vpop.trf.xlu0
    %v1877 = vpop.trf.xlu0
    %v1878 = vpop.trf.xlu0
    %v1879 = vpop.trf.xlu0
    %v1880 = vpop.trf.xlu0
    %v1881 = vpop.trf.xlu0
    %v1882 = vpop.trf.xlu0
    %v1883 = vpop.trf.xlu0
    %1884 = vxpose.xlu0.b32.start [1/16] %v1660, 128
    %1885 = vxpose.xlu0.b32.cont [2/16] %v1661, 128
    %1886 = vxpose.xlu0.b32.cont [3/16] %v1662, 128
    %1887 = vxpose.xlu0.b32.cont [4/16] %v1663, 128
    %1888 = vxpose.xlu0.b32.cont [5/16] %v1664, 128
    %1889 = vxpose.xlu0.b32.cont [6/16] %v1665, 128
    %1890 = vxpose.xlu0.b32.cont [7/16] %v1666, 128
    %1891 = vxpose.xlu0.b32.cont [8/16] %v1667, 128
    %1892 = vxpose.xlu0.b32.cont [9/16] %v1668, 128
    %1893 = vxpose.xlu0.b32.cont [10/16] %v1669, 128
    %1894 = vxpose.xlu0.b32.cont [11/16] %v1670, 128
    %1895 = vxpose.xlu0.b32.cont [12/16] %v1671, 128
    %1896 = vxpose.xlu0.b32.cont [13/16] %v1672, 128
    %1897 = vxpose.xlu0.b32.cont [14/16] %v1673, 128
    %1898 = vxpose.xlu0.b32.cont [15/16] %v1674, 128
    %1899 = vxpose.xlu0.b32.end [16/16] %v1675, 128
    %v1900 = vpop.trf.xlu0
    %v1901 = vpop.trf.xlu0
    %v1902 = vpop.trf.xlu0
    %v1903 = vpop.trf.xlu0
    %v1904 = vpop.trf.xlu0
    %v1905 = vpop.trf.xlu0
    %v1906 = vpop.trf.xlu0
    %v1907 = vpop.trf.xlu0
    %v1908 = vpop.trf.xlu0
    %v1909 = vpop.trf.xlu0
    %v1910 = vpop.trf.xlu0
    %v1911 = vpop.trf.xlu0
    %v1912 = vpop.trf.xlu0
    %v1913 = vpop.trf.xlu0
    %v1914 = vpop.trf.xlu0
    %v1915 = vpop.trf.xlu0
    %1916 = vxpose.xlu0.b32.start [1/16] %v1676, 128
    %1917 = vxpose.xlu0.b32.cont [2/16] %v1677, 128
    %1918 = vxpose.xlu0.b32.cont [3/16] %v1678, 128
    %1919 = vxpose.xlu0.b32.cont [4/16] %v1679, 128
    %1920 = vxpose.xlu0.b32.cont [5/16] %v1680, 128
    %1921 = vxpose.xlu0.b32.cont [6/16] %v1681, 128
    %1922 = vxpose.xlu0.b32.cont [7/16] %v1682, 128
    %1923 = vxpose.xlu0.b32.cont [8/16] %v1683, 128
    %1924 = vxpose.xlu0.b32.cont [9/16] %v1684, 128
    %1925 = vxpose.xlu0.b32.cont [10/16] %v1685, 128
    %1926 = vxpose.xlu0.b32.cont [11/16] %v1686, 128
    %1927 = vxpose.xlu0.b32.cont [12/16] %v1687, 128
    %1928 = vxpose.xlu0.b32.cont [13/16] %v1688, 128
    %1929 = vxpose.xlu0.b32.cont [14/16] %v1689, 128
    %1930 = vxpose.xlu0.b32.cont [15/16] %v1690, 128
    %1931 = vxpose.xlu0.b32.end [16/16] %v1691, 128
    %v1932 = vpop.trf.xlu0
    %v1933 = vpop.trf.xlu0
    %v1934 = vpop.trf.xlu0
    %v1935 = vpop.trf.xlu0
    %v1936 = vpop.trf.xlu0
    %v1937 = vpop.trf.xlu0
    %v1938 = vpop.trf.xlu0
    %v1939 = vpop.trf.xlu0
    %v1940 = vpop.trf.xlu0
    %v1941 = vpop.trf.xlu0
    %v1942 = vpop.trf.xlu0
    %v1943 = vpop.trf.xlu0
    %v1944 = vpop.trf.xlu0
    %v1945 = vpop.trf.xlu0
    %v1946 = vpop.trf.xlu0
    %v1947 = vpop.trf.xlu0
    %s1948 = scalar_lea.vmem [#allocation5], 3072
    %1949 = vst [vmem:[%s1948] sm:$0xff] %v1708
    %1950 = vst [vmem:[%s1948 + $0x8] sm:$0xff] %v1740
    %1951 = vst [vmem:[%s1948 + $0x10] sm:$0xff] %v1772
    %1952 = vst [vmem:[%s1948 + $0x18] sm:$0xff] %v1804
    %1953 = vst [vmem:[%s1948 + $0x20] sm:$0xff] %v1836
    %1954 = vst [vmem:[%s1948 + $0x28] sm:$0xff] %v1868
    %1955 = vst [vmem:[%s1948 + $0x30] sm:$0xff] %v1900
    %1956 = vst [vmem:[%s1948 + $0x38] sm:$0xff] %v1932
    %1957 = vst [vmem:[%s1948 + $0x40] sm:$0xff] %v1709
    %1958 = vst [vmem:[%s1948 + $0x48] sm:$0xff] %v1741
    %1959 = vst [vmem:[%s1948 + $0x50] sm:$0xff] %v1773
    %1960 = vst [vmem:[%s1948 + $0x58] sm:$0xff] %v1805
    %1961 = vst [vmem:[%s1948 + $0x60] sm:$0xff] %v1837
    %1962 = vst [vmem:[%s1948 + $0x68] sm:$0xff] %v1869
    %1963 = vst [vmem:[%s1948 + $0x70] sm:$0xff] %v1901
    %1964 = vst [vmem:[%s1948 + $0x78] sm:$0xff] %v1933
    %1965 = vst [vmem:[%s1948 + $0x80] sm:$0xff] %v1710
    %1966 = vst [vmem:[%s1948 + $0x88] sm:$0xff] %v1742
    %1967 = vst [vmem:[%s1948 + $0x90] sm:$0xff] %v1774
    %1968 = vst [vmem:[%s1948 + $0x98] sm:$0xff] %v1806
    %1969 = vst [vmem:[%s1948 + $0xa0] sm:$0xff] %v1838
    %1970 = vst [vmem:[%s1948 + $0xa8] sm:$0xff] %v1870
    %1971 = vst [vmem:[%s1948 + $0xb0] sm:$0xff] %v1902
    %1972 = vst [vmem:[%s1948 + $0xb8] sm:$0xff] %v1934
    %1973 = vst [vmem:[%s1948 + $0xc0] sm:$0xff] %v1711
    %1974 = vst [vmem:[%s1948 + $0xc8] sm:$0xff] %v1743
    %1975 = vst [vmem:[%s1948 + $0xd0] sm:$0xff] %v1775
    %1976 = vst [vmem:[%s1948 + $0xd8] sm:$0xff] %v1807
    %1977 = vst [vmem:[%s1948 + $0xe0] sm:$0xff] %v1839
    %1978 = vst [vmem:[%s1948 + $0xe8] sm:$0xff] %v1871
    %1979 = vst [vmem:[%s1948 + $0xf0] sm:$0xff] %v1903
    %1980 = vst [vmem:[%s1948 + $0xf8] sm:$0xff] %v1935
    %1981 = vst [vmem:[%s1948 + $0x100] sm:$0xff] %v1712
    %1982 = vst [vmem:[%s1948 + $0x108] sm:$0xff] %v1744
    %1983 = vst [vmem:[%s1948 + $0x110] sm:$0xff] %v1776
    %1984 = vst [vmem:[%s1948 + $0x118] sm:$0xff] %v1808
    %1985 = vst [vmem:[%s1948 + $0x120] sm:$0xff] %v1840
    %1986 = vst [vmem:[%s1948 + $0x128] sm:$0xff] %v1872
    %1987 = vst [vmem:[%s1948 + $0x130] sm:$0xff] %v1904
    %1988 = vst [vmem:[%s1948 + $0x138] sm:$0xff] %v1936
    %1989 = vst [vmem:[%s1948 + $0x140] sm:$0xff] %v1713
    %1990 = vst [vmem:[%s1948 + $0x148] sm:$0xff] %v1745
    %1991 = vst [vmem:[%s1948 + $0x150] sm:$0xff] %v1777
    %1992 = vst [vmem:[%s1948 + $0x158] sm:$0xff] %v1809
    %1993 = vst [vmem:[%s1948 + $0x160] sm:$0xff] %v1841
    %1994 = vst [vmem:[%s1948 + $0x168] sm:$0xff] %v1873
    %1995 = vst [vmem:[%s1948 + $0x170] sm:$0xff] %v1905
    %1996 = vst [vmem:[%s1948 + $0x178] sm:$0xff] %v1937
    %1997 = vst [vmem:[%s1948 + $0x180] sm:$0xff] %v1714
    %1998 = vst [vmem:[%s1948 + $0x188] sm:$0xff] %v1746
    %1999 = vst [vmem:[%s1948 + $0x190] sm:$0xff] %v1778
    %2000 = vst [vmem:[%s1948 + $0x198] sm:$0xff] %v1810
    %2001 = vst [vmem:[%s1948 + $0x1a0] sm:$0xff] %v1842
    %2002 = vst [vmem:[%s1948 + $0x1a8] sm:$0xff] %v1874
    %2003 = vst [vmem:[%s1948 + $0x1b0] sm:$0xff] %v1906
    %2004 = vst [vmem:[%s1948 + $0x1b8] sm:$0xff] %v1938
    %2005 = vst [vmem:[%s1948 + $0x1c0] sm:$0xff] %v1715
    %2006 = vst [vmem:[%s1948 + $0x1c8] sm:$0xff] %v1747
    %2007 = vst [vmem:[%s1948 + $0x1d0] sm:$0xff] %v1779
    %2008 = vst [vmem:[%s1948 + $0x1d8] sm:$0xff] %v1811
    %2009 = vst [vmem:[%s1948 + $0x1e0] sm:$0xff] %v1843
    %2010 = vst [vmem:[%s1948 + $0x1e8] sm:$0xff] %v1875
    %2011 = vst [vmem:[%s1948 + $0x1f0] sm:$0xff] %v1907
    %2012 = vst [vmem:[%s1948 + $0x1f8] sm:$0xff] %v1939
    %2013 = vst [vmem:[%s1948 + $0x200] sm:$0xff] %v1716
    %2014 = vst [vmem:[%s1948 + $0x208] sm:$0xff] %v1748
    %2015 = vst [vmem:[%s1948 + $0x210] sm:$0xff] %v1780
    %2016 = vst [vmem:[%s1948 + $0x218] sm:$0xff] %v1812
    %2017 = vst [vmem:[%s1948 + $0x220] sm:$0xff] %v1844
    %2018 = vst [vmem:[%s1948 + $0x228] sm:$0xff] %v1876
    %2019 = vst [vmem:[%s1948 + $0x230] sm:$0xff] %v1908
    %2020 = vst [vmem:[%s1948 + $0x238] sm:$0xff] %v1940
    %2021 = vst [vmem:[%s1948 + $0x240] sm:$0xff] %v1717
    %2022 = vst [vmem:[%s1948 + $0x248] sm:$0xff] %v1749
    %2023 = vst [vmem:[%s1948 + $0x250] sm:$0xff] %v1781
    %2024 = vst [vmem:[%s1948 + $0x258] sm:$0xff] %v1813
    %2025 = vst [vmem:[%s1948 + $0x260] sm:$0xff] %v1845
    %2026 = vst [vmem:[%s1948 + $0x268] sm:$0xff] %v1877
    %2027 = vst [vmem:[%s1948 + $0x270] sm:$0xff] %v1909
    %2028 = vst [vmem:[%s1948 + $0x278] sm:$0xff] %v1941
    %2029 = vst [vmem:[%s1948 + $0x280] sm:$0xff] %v1718
    %2030 = vst [vmem:[%s1948 + $0x288] sm:$0xff] %v1750
    %2031 = vst [vmem:[%s1948 + $0x290] sm:$0xff] %v1782
    %2032 = vst [vmem:[%s1948 + $0x298] sm:$0xff] %v1814
    %2033 = vst [vmem:[%s1948 + $0x2a0] sm:$0xff] %v1846
    %2034 = vst [vmem:[%s1948 + $0x2a8] sm:$0xff] %v1878
    %2035 = vst [vmem:[%s1948 + $0x2b0] sm:$0xff] %v1910
    %2036 = vst [vmem:[%s1948 + $0x2b8] sm:$0xff] %v1942
    %2037 = vst [vmem:[%s1948 + $0x2c0] sm:$0xff] %v1719
    %2038 = vst [vmem:[%s1948 + $0x2c8] sm:$0xff] %v1751
    %2039 = vst [vmem:[%s1948 + $0x2d0] sm:$0xff] %v1783
    %2040 = vst [vmem:[%s1948 + $0x2d8] sm:$0xff] %v1815
    %2041 = vst [vmem:[%s1948 + $0x2e0] sm:$0xff] %v1847
    %2042 = vst [vmem:[%s1948 + $0x2e8] sm:$0xff] %v1879
    %2043 = vst [vmem:[%s1948 + $0x2f0] sm:$0xff] %v1911
    %2044 = vst [vmem:[%s1948 + $0x2f8] sm:$0xff] %v1943
    %2045 = vst [vmem:[%s1948 + $0x300] sm:$0xff] %v1720
    %2046 = vst [vmem:[%s1948 + $0x308] sm:$0xff] %v1752
    %2047 = vst [vmem:[%s1948 + $0x310] sm:$0xff] %v1784
    %2048 = vst [vmem:[%s1948 + $0x318] sm:$0xff] %v1816
    %2049 = vst [vmem:[%s1948 + $0x320] sm:$0xff] %v1848
    %2050 = vst [vmem:[%s1948 + $0x328] sm:$0xff] %v1880
    %2051 = vst [vmem:[%s1948 + $0x330] sm:$0xff] %v1912
    %2052 = vst [vmem:[%s1948 + $0x338] sm:$0xff] %v1944
    %2053 = vst [vmem:[%s1948 + $0x340] sm:$0xff] %v1721
    %2054 = vst [vmem:[%s1948 + $0x348] sm:$0xff] %v1753
    %2055 = vst [vmem:[%s1948 + $0x350] sm:$0xff] %v1785
    %2056 = vst [vmem:[%s1948 + $0x358] sm:$0xff] %v1817
    %2057 = vst [vmem:[%s1948 + $0x360] sm:$0xff] %v1849
    %2058 = vst [vmem:[%s1948 + $0x368] sm:$0xff] %v1881
    %2059 = vst [vmem:[%s1948 + $0x370] sm:$0xff] %v1913
    %2060 = vst [vmem:[%s1948 + $0x378] sm:$0xff] %v1945
    %2061 = vst [vmem:[%s1948 + $0x380] sm:$0xff] %v1722
    %2062 = vst [vmem:[%s1948 + $0x388] sm:$0xff] %v1754
    %2063 = vst [vmem:[%s1948 + $0x390] sm:$0xff] %v1786
    %2064 = vst [vmem:[%s1948 + $0x398] sm:$0xff] %v1818
    %2065 = vst [vmem:[%s1948 + $0x3a0] sm:$0xff] %v1850
    %2066 = vst [vmem:[%s1948 + $0x3a8] sm:$0xff] %v1882
    %2067 = vst [vmem:[%s1948 + $0x3b0] sm:$0xff] %v1914
    %2068 = vst [vmem:[%s1948 + $0x3b8] sm:$0xff] %v1946
    %2069 = vst [vmem:[%s1948 + $0x3c0] sm:$0xff] %v1723
    %2070 = vst [vmem:[%s1948 + $0x3c8] sm:$0xff] %v1755
    %2071 = vst [vmem:[%s1948 + $0x3d0] sm:$0xff] %v1787
    %2072 = vst [vmem:[%s1948 + $0x3d8] sm:$0xff] %v1819
    %2073 = vst [vmem:[%s1948 + $0x3e0] sm:$0xff] %v1851
    %2074 = vst [vmem:[%s1948 + $0x3e8] sm:$0xff] %v1883
    %2075 = vst [vmem:[%s1948 + $0x3f0] sm:$0xff] %v1915
    %2076 = vst [vmem:[%s1948 + $0x3f8] sm:$0xff] %v1947
    // Predicated region
    $region10: #{tpu_custom_call.1} parent=1 // pred_check
      _
    $region11: #{tpu_custom_call.1} parent=1 // pred_check_branch
      %2078 = sbr.rel (0) target = $region13
    $region12: #{tpu_custom_call.1} parent=1 // pred_region
      %s2080 = ssub.s32 65536, 65536
      %2081 = vsyncadd [#allocation4], %s2080
      %s2082 = sshll.u32 [#allocation5], 4
      %s2083 = int_to_ptr.vmem [resolvable:$true] %s2082
      %2088 = dma.vmem_to_hbm [thread:$0]  %s2083, 65536, %s1, [#allocation4], 1024, 1024, 64
    $region13: #{tpu_custom_call.1} parent=1 // pred_fallthru
      _
    // Predicated region
    $region14: #{tpu_custom_call.1} parent=1 // pred_check
      _
    $region15: #{tpu_custom_call.1} parent=1 // pred_check_branch
      %2090 = sbr.rel (0) target = $region17
    $region16: #{tpu_custom_call.1} parent=1 // pred_region
      %2091 = dma.done [#allocation4], 65536
    $region17: #{tpu_custom_call.1} parent=1 // pred_fallthru
      _
    %2092 = vsyncpa [#allocation3], 1
    %2093 = vsyncpa [#allocation4], 1

</llo_original>
